<compile_context>
chip_gen: v6e
topology: v6e:2x2x1
jax: 0.10.0
libtpu: 0.0.40
codegen_flags: <defaults>
</compile_context>

<pallas_src>
import numpy as np
import jax
import jax.numpy as jnp
from jax import lax
from jax.experimental import pallas as pl
from jax.experimental.pallas import tpu as pltpu


# ----------------------------------------------------------------------------
# Host-side construction of the exact separable linear operators
# ----------------------------------------------------------------------------
def _pool_sum_matrix(n):
    """S[i,k] = 1 if |i-k| <= 1 else 0  (3-tap sum with zero padding)."""
    m = np.zeros((n, n), np.float64)
    for i in range(n):
        for k in range(max(0, i - 1), min(n, i + 2)):
            m[i, k] = 1.0
    return m


def _bilinear_matrix(out_size, in_size):
    """PyTorch F.interpolate(mode='bilinear', align_corners=False) as a matrix."""
    m = np.zeros((out_size, in_size), np.float64)
    scale = in_size / out_size
    for i in range(out_size):
        src = max((i + 0.5) * scale - 0.5, 0.0)
        i0 = min(int(np.floor(src)), in_size - 1)
        i1 = min(i0 + 1, in_size - 1)
        lam = src - i0
        m[i, i0] += 1.0 - lam
        m[i, i1] += lam
    return m


def _axis_operator(out_size, in_size):
    """(bilinear @ 3-tap-sum)/3 along one spatial axis -> (out, in) f32."""
    return (_bilinear_matrix(out_size, in_size)
            @ _pool_sum_matrix(in_size) / 3.0).astype(np.float32)


def _pick_tile(total, max_tile, align):
    """Largest divisor of `total` that is <= max_tile and a multiple of `align`
    (falls back to `total` -> single full block)."""
    if total <= max_tile:
        return total
    t = (max_tile // align) * align
    while t >= align:
        if total % t == 0:
            return t
        t -= align
    return total


# ----------------------------------------------------------------------------
# Kernel A: separable pool(3x3, s1, p1) + bilinear resize, per pyramid level
# ----------------------------------------------------------------------------
def _pool_resize_kernel(x_ref, awt_ref, ah_ref, o_ref):
    # x_ref  : (1, TC, Hin, Win) bf16
    # awt_ref: (Win, W0)         bf16   (M_W transposed)
    # ah_ref : (H0, Hin)         bf16   (M_H)
    # o_ref  : (1, TC, H0, W0)   bf16
    tc = x_ref.shape[1]
    win, w0 = awt_ref.shape
    h0, hin = ah_ref.shape
    x = x_ref[0]                                                   # (TC,Hin,Win)
    awt_b = jnp.broadcast_to(awt_ref[...], (tc, win, w0))          # (TC,Win,W0)
    # Contract W: canonical batched matmul (batch=TC, M=Hin, K=Win, N=W0).
    y1 = jnp.einsum('chw,cwp->chp', x, awt_b,
                    preferred_element_type=jnp.float32)            # (TC,Hin,W0)
    ah_b = jnp.broadcast_to(ah_ref[...], (tc, h0, hin))            # (TC,H0,Hin)
    # Contract H: batched matmul (batch=TC, M=H0, K=Hin, N=W0).
    y2 = jnp.einsum('coh,chp->cop', ah_b, y1.astype(jnp.bfloat16),
                    preferred_element_type=jnp.float32)            # (TC,H0,W0)
    o_ref[0] = y2.astype(o_ref.dtype)


def _pool_resize_level(x, a_h, a_w_t):
    """x: (B, C, Hin, Win) bf16; a_h: (H0, Hin) bf16; a_w_t: (Win, W0) bf16
       -> (B, C, H0, W0) bf16."""
    b, c, hin, win = x.shape
    h0 = a_h.shape[0]
    w0 = a_w_t.shape[1]
    tc = _pick_tile(c, 128, 8)
    return pl.pallas_call(
        _pool_resize_kernel,
        out_shape=jax.ShapeDtypeStruct((b, c, h0, w0), jnp.bfloat16),
        grid=(b, c // tc),
        in_specs=[
            pl.BlockSpec((1, tc, hin, win), lambda i, j: (i, j, 0, 0)),
            pl.BlockSpec((win, w0), lambda i, j: (0, 0)),
            pl.BlockSpec((h0, hin), lambda i, j: (0, 0)),
        ],
        out_specs=pl.BlockSpec((1, tc, h0, w0), lambda i, j: (i, j, 0, 0)),
        compiler_params=pltpu.CompilerParams(
            dimension_semantics=("parallel", "parallel"),
            vmem_limit_bytes=48 * 1024 * 1024),
    )(x, a_w_t, a_h)


# ----------------------------------------------------------------------------
# Kernel B: fused 1x1 coord-conv over levels, NCHW output, coords folded in bias
# ----------------------------------------------------------------------------
def _make_coordconv_kernel(n_levels):
    def kernel(*refs):
        xs = refs[:n_levels]                    # each (1, C_l, TS) bf16
        ws = refs[n_levels:2 * n_levels]        # each (Cout, C_l) bf16
        cb_ref = refs[2 * n_levels]             # (Cout, TS) f32 (coords + bias)
        o_ref = refs[2 * n_levels + 1]          # (1, Cout, TS) f32
        acc = cb_ref[...]
        for l in range(n_levels):
            acc = acc + jnp.dot(ws[l][...], xs[l][0],
                                preferred_element_type=jnp.float32)
        o_ref[0] = acc.astype(o_ref.dtype)
    return kernel


def _coordconv_levels(samples, w_levels, coord_bias):
    """samples: list of (B, C_l, S) bf16; w_levels: list of (Cout, C_l) bf16;
    coord_bias: (Cout, S) f32 -> (B, Cout, S) f32 (NCHW-flat)."""
    n_levels = len(samples)
    b = samples[0].shape[0]
    s = samples[0].shape[2]
    cout = coord_bias.shape[0]
    ts = _pick_tile(s, 1024, 128)

    in_specs = []
    for x in samples:
        c_l = x.shape[1]
        in_specs.append(pl.BlockSpec((1, c_l, ts), lambda i, j: (i, 0, j)))
    for w in w_levels:
        c_l = w.shape[1]
        in_specs.append(pl.BlockSpec((cout, c_l), lambda i, j: (0, 0)))
    in_specs.append(pl.BlockSpec((cout, ts), lambda i, j: (0, j)))

    return pl.pallas_call(
        _make_coordconv_kernel(n_levels),
        out_shape=jax.ShapeDtypeStruct((b, cout, s), jnp.float32),
        grid=(b, s // ts),
        in_specs=in_specs,
        out_specs=pl.BlockSpec((1, cout, ts), lambda i, j: (i, 0, j)),
        compiler_params=pltpu.CompilerParams(
            dimension_semantics=("parallel", "parallel"),
            vmem_limit_bytes=48 * 1024 * 1024),
    )(*samples, *w_levels, coord_bias)


# ----------------------------------------------------------------------------
# Descriptor forward (Pallas path)
# ----------------------------------------------------------------------------
def descriptor_forward(p, conv_w, conv_b):
    """p: list of NCHW f32 arrays (square spatial maps, as required by the
    torch module); conv_w: (Cout, dim+2); conv_b: (Cout,) -> (B, Cout, H0, W0)."""
    batch = p[0].shape[0]
    h0, w0 = int(p[0].shape[2]), int(p[0].shape[3])
    s_out = h0 * w0
    cout = conv_w.shape[0]
    chans = [int(o.shape[1]) for o in p]
    dim = sum(chans)

    # 1) per-level separable pool + resize (to level-0 spatial size), bf16.
    samples = []
    for o in p:
        hin, win = int(o.shape[2]), int(o.shape[3])
        a_h = jnp.asarray(_axis_operator(h0, hin), dtype=jnp.bfloat16)
        a_w_t = jnp.asarray(_axis_operator(w0, win).T, dtype=jnp.bfloat16)
        y = _pool_resize_level(o.astype(jnp.bfloat16), a_h, a_w_t)
        samples.append(y.reshape(batch, o.shape[1], s_out))      # free reshape

    # 2) AddCoords folded exactly into a (Cout, S) affine term:
    #    xx varies along H, yy varies along W, range [-1, 1].
    conv_w = jnp.asarray(conv_w, jnp.float32)
    conv_b = jnp.asarray(conv_b, jnp.float32)
    if h0 > 1:
        xx = 2.0 * jnp.arange(h0, dtype=jnp.float32) / (h0 - 1) - 1.0
    else:
        xx = jnp.zeros((h0,), jnp.float32)   # guard size-1 maps (torch would nan)
    if w0 > 1:
        yy = 2.0 * jnp.arange(w0, dtype=jnp.float32) / (w0 - 1) - 1.0
    else:
        yy = jnp.zeros((w0,), jnp.float32)
    xx_flat = jnp.broadcast_to(xx[:, None], (h0, w0)).reshape(1, s_out)
    yy_flat = jnp.broadcast_to(yy[None, :], (h0, w0)).reshape(1, s_out)
    coord_bias = (conv_w[:, dim:dim + 1] * xx_flat
                  + conv_w[:, dim + 1:dim + 2] * yy_flat
                  + conv_b[:, None])                              # (Cout, S) f32

    # 3) fused 1x1 conv over levels; output already NCHW-flat.
    offs = np.cumsum([0] + chans)
    w_levels = [conv_w[:, int(offs[l]):int(offs[l + 1])].astype(jnp.bfloat16)
                for l in range(len(p))]
    out = _coordconv_levels(samples, w_levels, coord_bias)        # (B, Cout, S)
    return out.reshape(batch, cout, h0, w0)


# ----------------------------------------------------------------------------
# Pure-JAX reference (direct op-by-op translation of the PyTorch forward)
# ----------------------------------------------------------------------------
def _ref_avg_pool3x3(x):
    s = lax.reduce_window(x, 0.0, lax.add, (1, 1, 3, 3), (1, 1, 1, 1),
                          padding=((0, 0), (0, 0), (1, 1), (1, 1)))
    return s / 9.0  # count_include_pad=True


def _ref_bilinear(x, out_h, out_w):
    _, _, h, w = x.shape

    def idx(out_size, in_size):
        i = np.arange(out_size)
        src = np.maximum((i + 0.5) * (in_size / out_size) - 0.5, 0.0)
        i0 = np.minimum(np.floor(src).astype(np.int32), in_size - 1)
        i1 = np.minimum(i0 + 1, in_size - 1)
        lam = (src - i0).astype(np.float32)
        return i0, i1, lam

    h0i, h1i, lh = idx(out_h, h)
    w0i, w1i, lw = idx(out_w, w)
    top = x[:, :, h0i, :] * (1 - lh)[None, None, :, None] \
        + x[:, :, h1i, :] * lh[None, None, :, None]
    out = top[:, :, :, w0i] * (1 - lw)[None, None, None, :] \
        + top[:, :, :, w1i] * lw[None, None, None, :]
    return out


def descriptor_reference(p, conv_w, conv_b):
    sample = None
    for o in p:
        o = _ref_avg_pool3x3(o)
        if sample is None:
            sample = o
        else:
            o = _ref_bilinear(o, sample.shape[2], sample.shape[2])
            sample = jnp.concatenate([sample, o], axis=1)
    b, _, h, w = sample.shape
    xx = jnp.broadcast_to(
        (2.0 * jnp.arange(h, dtype=jnp.float32) / (h - 1) - 1.0)[None, None, :, None],
        (b, 1, h, w))
    yy = jnp.broadcast_to(
        (2.0 * jnp.arange(w, dtype=jnp.float32) / (w - 1) - 1.0)[None, None, None, :],
        (b, 1, h, w))
    full = jnp.concatenate([sample, xx, yy], axis=1)
    out = jnp.einsum('oc,bchw->bohw', conv_w, full,
                     precision=lax.Precision.HIGHEST)
    return out + conv_b[None, :, None, None]


# ----------------------------------------------------------------------------
if __name__ == "__main__":
    key = jax.random.PRNGKey(0)
    k0, k1, k2, kw, kb = jax.random.split(key, 5)

    # Small shapes consistent with the module: 3 pyramid levels (dim = sum of
    # channels), square spatial maps, gamma_d reduction on the 1x1 coord-conv.
    batch = 2
    chans = (16, 32, 64)          # "dim" = 112 (stands in for 1792)
    sizes = (16, 8, 4)
    gamma_d = 4
    dim = sum(chans)
    cout = dim // gamma_d

    keys_in = (k0, k1, k2)
    p = [jax.random.normal(keys_in[i], (batch, chans[i], sizes[i], sizes[i]),
                           dtype=jnp.float32) for i in range(3)]

    # CoordConv2d(dim, dim // gamma_d, 1): conv weight (Cout, dim+2, 1, 1) + bias.
    conv_w = jax.random.normal(kw, (cout, dim + 2), dtype=jnp.float32) * 0.05
    conv_b = jax.random.normal(kb, (cout,), dtype=jnp.float32) * 0.01

    out = descriptor_forward(p, conv_w, conv_b)
    out = jax.block_until_ready(out)

    assert out.shape == (batch, cout, sizes[0], sizes[0]), out.shape
    ref = jax.block_until_ready(descriptor_reference(p, conv_w, conv_b))
    np.testing.assert_allclose(np.asarray(out), np.asarray(ref),
                               rtol=2e-2, atol=2e-2)
    print("KERNEL_OK")
</pallas_src>

<mosaic_0001>
module attributes {stable_mosaic.version = 11 : i64} {
  func.func @_pool_resize_kernel(%arg0: i32, %arg1: i32, %arg2: memref<1x16x16x16xbf16, #tpu.memory_space<vmem>>, %arg3: memref<16x16xbf16, #tpu.memory_space<vmem>>, %arg4: memref<16x16xbf16, #tpu.memory_space<vmem>>, %arg5: memref<1x16x16x16xbf16, #tpu.memory_space<vmem>>) attributes {dimension_semantics = [#tpu.dimension_semantics<parallel>, #tpu.dimension_semantics<parallel>], iteration_bounds = array<i64: 2, 1>, scalar_prefetch = 0 : i64, scratch_operands = 0 : i64, tpu.core_type = #tpu.core_type<tc>, window_params = [{transform_indices = @transform_0, window_bounds = array<i64: 1, 16, 16, 16>}, {pipeline_mode = #tpu.pipeline_mode<synchronous>, transform_indices = @transform_1, window_bounds = array<i64: 16, 16>}, {pipeline_mode = #tpu.pipeline_mode<synchronous>, transform_indices = @transform_2, window_bounds = array<i64: 16, 16>}, {transform_indices = @transform_3, window_bounds = array<i64: 1, 16, 16, 16>}]} {
    %c0 = arith.constant 0 : index
    %c0_0 = arith.constant 0 : index
    %c0_1 = arith.constant 0 : index
    %c0_2 = arith.constant 0 : index
    %0 = vector.load %arg2[%c0, %c0_0, %c0_1, %c0_2] : memref<1x16x16x16xbf16, #tpu.memory_space<vmem>>, vector<1x16x16x16xbf16>
    %1 = vector.shape_cast %0 : vector<1x16x16x16xbf16> to vector<16x16x16xbf16>
    %c0_3 = arith.constant 0 : index
    %c0_4 = arith.constant 0 : index
    %2 = vector.load %arg3[%c0_3, %c0_4] : memref<16x16xbf16, #tpu.memory_space<vmem>>, vector<16x16xbf16>
    %3 = vector.shape_cast %2 : vector<16x16xbf16> to vector<1x16x16xbf16>
    %4 = vector.broadcast %3 : vector<1x16x16xbf16> to vector<16x16x16xbf16>
    "tpu.trace_start"() <{level = 10 : i32, message = "chw,cwp->chp"}> : () -> ()
    %cst = arith.constant dense<0.000000e+00> : vector<16x16x16xf32>
    %5 = tpu.matmul %1, %4, %cst {dimension_numbers = #tpu.dot_dimension_numbers<[2], [1], [1], [2], [0, 0, 0, 1, 1, 2], [0], [0]>} : vector<16x16x16xbf16>, vector<16x16x16xbf16>, vector<16x16x16xf32> -> vector<16x16x16xf32>
    "tpu.trace_stop"() : () -> ()
    %c0_5 = arith.constant 0 : index
    %c0_6 = arith.constant 0 : index
    %6 = vector.load %arg4[%c0_5, %c0_6] : memref<16x16xbf16, #tpu.memory_space<vmem>>, vector<16x16xbf16>
    %7 = vector.shape_cast %6 : vector<16x16xbf16> to vector<1x16x16xbf16>
    %8 = vector.broadcast %7 : vector<1x16x16xbf16> to vector<16x16x16xbf16>
    %9 = arith.truncf %5 : vector<16x16x16xf32> to vector<16x16x16xbf16>
    "tpu.trace_start"() <{level = 10 : i32, message = "coh,chp->cop"}> : () -> ()
    %cst_7 = arith.constant dense<0.000000e+00> : vector<16x16x16xf32>
    %10 = tpu.matmul %8, %9, %cst_7 {dimension_numbers = #tpu.dot_dimension_numbers<[2], [1], [1], [2], [0, 0, 0, 1, 1, 2], [0], [0]>} : vector<16x16x16xbf16>, vector<16x16x16xbf16>, vector<16x16x16xf32> -> vector<16x16x16xf32>
    "tpu.trace_stop"() : () -> ()
    %11 = arith.truncf %10 : vector<16x16x16xf32> to vector<16x16x16xbf16>
    %c0_8 = arith.constant 0 : index
    %c0_9 = arith.constant 0 : index
    %c0_10 = arith.constant 0 : index
    %c0_11 = arith.constant 0 : index
    %12 = vector.load %arg5[%c0_8, %c0_9, %c0_10, %c0_11] : memref<1x16x16x16xbf16, #tpu.memory_space<vmem>>, vector<1x16x16x16xbf16>
    %13 = vector.shape_cast %12 : vector<1x16x16x16xbf16> to vector<16x16x16xbf16>
    %14 = vector.shape_cast %11 : vector<16x16x16xbf16> to vector<1x16x16x16xbf16>
    tpu.vector_store %arg5[%c0_8, %c0_9, %c0_10, %c0_11], %14 {strides = array<i32>} : memref<1x16x16x16xbf16, #tpu.memory_space<vmem>>, vector<1x16x16x16xbf16>,
    return
  }
  func.func @transform_0(%arg0: i32, %arg1: i32) -> (i32, i32, i32, i32) {
    %c0_i32 = arith.constant 0 : i32
    %c0_i32_0 = arith.constant 0 : i32
    %c0_i32_1 = arith.constant 0 : i32
    return %arg0, %arg1, %c0_i32, %c0_i32_0 : i32, i32, i32, i32
  }
  func.func @transform_1(%arg0: i32, %arg1: i32) -> (i32, i32) {
    %c0_i32 = arith.constant 0 : i32
    %c0_i32_0 = arith.constant 0 : i32
    %c0_i32_1 = arith.constant 0 : i32
    return %c0_i32, %c0_i32_0 : i32, i32
  }
  func.func @transform_2(%arg0: i32, %arg1: i32) -> (i32, i32) {
    %c0_i32 = arith.constant 0 : i32
    %c0_i32_0 = arith.constant 0 : i32
    %c0_i32_1 = arith.constant 0 : i32
    return %c0_i32, %c0_i32_0 : i32, i32
  }
  func.func @transform_3(%arg0: i32, %arg1: i32) -> (i32, i32, i32, i32) {
    %c0_i32 = arith.constant 0 : i32
    %c0_i32_0 = arith.constant 0 : i32
    %c0_i32_1 = arith.constant 0 : i32
    return %arg0, %arg1, %c0_i32, %c0_i32_0 : i32, i32, i32, i32
  }
}

</mosaic_0001>

<llo_original>
// kernel: tpu_custom_call.1
$region0: #{tpu_custom_call.1}
  #allocation0 [shape = 'u32[]', space=smem, size = 0x4, offset = 0x4, fixed_abs, tag = 'smem constant byte address 0x4 - core index']
  #allocation1 [shape = 'u32[144,128]{1,0:T(1,128)}', space=vmem, size = 0x12000, scoped, tag = 'internal scratch']
  %s0 = inlined_call_operand.hbm [shape: bf16[2,16,16,16], index: 0, kind: input, shape index: {}]
  %s1 = inlined_call_operand.hbm [shape: bf16[16,16], index: 1, kind: input, shape index: {}]
  %s2 = inlined_call_operand.hbm [shape: bf16[16,16], index: 2, kind: input, shape index: {}]
  %s3 = inlined_call_operand.hbm [shape: bf16[2,16,16,16], index: 3, kind: output, shape index: {}]
  %s4 = sld [smem:[#allocation0]]
  $region57: #{tpu_custom_call.1} parent=0
    _
  %s6 = ssub.s32 1, %s4
  %s7 = scalar_select 0, %s6, %s4
  $region1: #{tpu_custom_call.1} parent=0
    #allocation2 [shape = 'u8[131072]{0}', space=vmem, size = 0x20000, scoped, tag = 'input window, operand 0']
    #allocation3 [shape = 's32[2]{0}', space=sflag, size = 0x8, scoped, tag = 'scoped memory for tpu_custom_call.1']
    #allocation4 [shape = 's32[2]{0}', space=sflag, size = 0x8, scoped, tag = 'scoped memory for tpu_custom_call.1']
    #allocation5 [shape = 'u8[4096]{0}', space=vmem, size = 0x1000, scoped, tag = 'input window, operand 1, single buffered']
    #allocation6 [shape = 's32[1]{0}', space=sflag, size = 0x4, scoped, tag = 'scoped memory for tpu_custom_call.1']
    #allocation7 [shape = 'u8[4096]{0}', space=vmem, size = 0x1000, scoped, tag = 'input window, operand 2, single buffered']
    #allocation8 [shape = 'u8[131072]{0}', space=vmem, size = 0x20000, scoped, tag = 'output window, operand 0']
    %8 = vsyncpa [#allocation3], 0
    %s9 = scalar_lea.sflag [#allocation3], 1
    %10 = vsyncpa %s9, 0
    %11 = vsyncpa [#allocation6], 0
    %12 = vsyncpa [#allocation4], 0
    %s13 = scalar_lea.sflag [#allocation4], 1
    %14 = vsyncpa %s13, 0
    loop: start=0, step=1, limit=4
    $region2: #{tpu_custom_call.1} parent=1 // loop_pre_header
      _
    $region3: #{tpu_custom_call.1} parent=1 // loop_header
      %s16 = sphi 0, %s20
      %p17 = scmp.ge.s32.totalorder %s16, 4
      %s23 = sphi 0, %s35
      %s24 = sphi 0, %s31
      %s25 = sphi 0, %s23
      %s26 = sphi 0, %s24
      %s27 = sphi 0, %s25
      %s28 = sphi 0, %s26
      %s40 = sphi 0, %s42
      %s43 = sphi 0, %s40
      %s44 = sphi 0, %s43
      %s60 = sphi 0, %s44
      %s64 = sphi 0, %s64
      %s66 = sphi 0, %s64
      %s67 = sphi 0, %s66
      %s81 = sphi 0, %s67
      %s85 = sphi 0, %s85
      %s87 = sphi 0, %s85
      %s88 = sphi 0, %s87
      %s102 = sphi 0, %s88
      %s110 = sphi 0, %s112
      %s113 = sphi 0, %s110
      %s114 = sphi 0, %s113
      %s130 = sphi 0, %s114
    $region4: #{tpu_custom_call.1} parent=1 // loop_header_branch
      %19 = sbr.rel (%p17) target = $region8
    $region5: #{tpu_custom_call.1} parent=1 // loop_body
      %s21 = ssub.s32 %s16, 1
      %s22 = ssub.s32 %s16, 2
      %s29 = sadd.s32 1, %s24
      %p30 = scmp.ge.s32.totalorder %s29, 1
      %s31 = scalar_select %p30, 0, %s29
      %s32 = sadd.s32 1, %s23
      %s33 = scalar_select %p30, %s32, %s23
      %p34 = scmp.ge.s32.totalorder %s33, 2
      %s35 = scalar_select %p34, 0, %s33
      %s36 = ssub.s32 %s23, %s35
      %s37 = ssub.s32 %s24, %s31
      %s38 = sor.u32 %s36, %s37
      %p39 = scmp.eq.s32.totalorder %s38, 0
      %s41 = sadd.s32 %s40, 1
      %s42 = scalar_select %p39, %s40, %s41
      %p45 = pneg %p39
      %p46 = scmp.eq.s32.totalorder %s16, 1
      %p47 = por %p45, %p46
      %p48 = scmp.ne.s32.totalorder %s40, %s43
      %p49 = scmp.eq.s32.totalorder %s16, 0
      %p50 = por %p48, %p49
      %p51 = scmp.ne.s32.totalorder %s40, %s43
      %p52 = scmp.eq.s32.totalorder %s21, 1
      %p53 = por %p51, %p52
      %p54 = scmp.ne.s32.totalorder %s43, %s44
      %p55 = scmp.eq.s32.totalorder %s21, 0
      %p56 = por %p54, %p55
      %p57 = scmp.ne.s32.totalorder %s43, %s44
      %p58 = scmp.eq.s32.totalorder %s22, 1
      %p59 = por %p57, %p58
      %p61 = scmp.ne.s32.totalorder %s44, %s60
      %p62 = scmp.eq.s32.totalorder %s22, 0
      %p63 = por %p61, %p62
      %s65 = sadd.s32 %s64, 1
      %p68 = scmp.eq.s32.totalorder %s16, 1
      %p69 = scmp.ne.s32.totalorder %s64, %s66
      %p70 = scmp.eq.s32.totalorder %s16, 0
      %p71 = por %p69, %p70
      %p72 = scmp.ne.s32.totalorder %s64, %s66
      %p73 = scmp.eq.s32.totalorder %s21, 1
      %p74 = por %p72, %p73
      %p75 = scmp.ne.s32.totalorder %s66, %s67
      %p76 = scmp.eq.s32.totalorder %s21, 0
      %p77 = por %p75, %p76
      %p78 = scmp.ne.s32.totalorder %s66, %s67
      %p79 = scmp.eq.s32.totalorder %s22, 1
      %p80 = por %p78, %p79
      %p82 = scmp.ne.s32.totalorder %s67, %s81
      %p83 = scmp.eq.s32.totalorder %s22, 0
      %p84 = por %p82, %p83
      %s86 = sadd.s32 %s85, 1
      %p89 = scmp.eq.s32.totalorder %s16, 1
      %p90 = scmp.ne.s32.totalorder %s85, %s87
      %p91 = scmp.eq.s32.totalorder %s16, 0
      %p92 = por %p90, %p91
      %p93 = scmp.ne.s32.totalorder %s85, %s87
      %p94 = scmp.eq.s32.totalorder %s21, 1
      %p95 = por %p93, %p94
      %p96 = scmp.ne.s32.totalorder %s87, %s88
      %p97 = scmp.eq.s32.totalorder %s21, 0
      %p98 = por %p96, %p97
      %p99 = scmp.ne.s32.totalorder %s87, %s88
      %p100 = scmp.eq.s32.totalorder %s22, 1
      %p101 = por %p99, %p100
      %p103 = scmp.ne.s32.totalorder %s88, %s102
      %p104 = scmp.eq.s32.totalorder %s22, 0
      %p105 = por %p103, %p104
      %s106 = ssub.s32 %s23, %s35
      %s107 = ssub.s32 %s24, %s31
      %s108 = sor.u32 %s106, %s107
      %p109 = scmp.eq.s32.totalorder %s108, 0
      %s111 = sadd.s32 %s110, 1
      %s112 = scalar_select %p109, %s110, %s111
      %p115 = pneg %p109
      %p116 = scmp.eq.s32.totalorder %s16, 1
      %p117 = por %p115, %p116
      %p118 = scmp.ne.s32.totalorder %s110, %s113
      %p119 = scmp.eq.s32.totalorder %s16, 0
      %p120 = por %p118, %p119
      %p121 = scmp.ne.s32.totalorder %s110, %s113
      %p122 = scmp.eq.s32.totalorder %s21, 1
      %p123 = por %p121, %p122
      %p124 = scmp.ne.s32.totalorder %s113, %s114
      %p125 = scmp.eq.s32.totalorder %s21, 0
      %p126 = por %p124, %p125
      %p127 = scmp.ne.s32.totalorder %s113, %s114
      %p128 = scmp.eq.s32.totalorder %s22, 1
      %p129 = por %p127, %p128
      %p131 = scmp.ne.s32.totalorder %s114, %s130
      %p132 = scmp.eq.s32.totalorder %s22, 0
      %p133 = por %p131, %p132
      %p134 = scmp.le.s32.totalorder 1, %s16
      %p135 = scmp.lt.s32.totalorder %s16, 3
      %p136 = pnand %p134, %p135
      %p137 = pneg %p136
      // Predicated region
      $region9: #{tpu_custom_call.1} parent=5 // pred_check
        _
      $region10: #{tpu_custom_call.1} parent=5 // pred_check_branch
        %139 = sbr.rel (%p136) target = $region12
      $region11: #{tpu_custom_call.1} parent=5 // pred_region
        %s140 = ssub.s32 %s16, 1
        // Predicated region
        $region13: #{tpu_custom_call.1} parent=11 // pred_check
          %p141 = pneg %p77
        $region14: #{tpu_custom_call.1} parent=11 // pred_check_branch
          %143 = sbr.rel (%p141) target = $region16
        $region15: #{tpu_custom_call.1} parent=11 // pred_region
          %s145 = ssub.s32 128, 128
          %146 = vsyncadd [#allocation6], %s145
          %s147 = sshll.u32 [#allocation5], 4
          %s148 = int_to_ptr.vmem [resolvable:$true] %s147
          %153 = dma.hbm_to_vmem [thread:$0]  %s1, 128, %s148, [#allocation6], 64, 64, 4
        $region16: #{tpu_custom_call.1} parent=11 // pred_fallthru
          _
        // Predicated region
        $region17: #{tpu_custom_call.1} parent=11 // pred_check
          %p154 = pneg %p98
        $region18: #{tpu_custom_call.1} parent=11 // pred_check_branch
          %156 = sbr.rel (%p154) target = $region20
        $region19: #{tpu_custom_call.1} parent=11 // pred_region
          %s158 = ssub.s32 128, 128
          %159 = vsyncadd [#allocation6], %s158
          %s160 = sshll.u32 [#allocation7], 4
          %s161 = int_to_ptr.vmem [resolvable:$true] %s160
          %166 = dma.hbm_to_vmem [thread:$0]  %s2, 128, %s161, [#allocation6], 64, 64, 4
        $region20: #{tpu_custom_call.1} parent=11 // pred_fallthru
          _
      $region12: #{tpu_custom_call.1} parent=5 // pred_fallthru
        _
      %p167 = scmp.lt.s32.totalorder %s16, 2
      // Predicated region
      $region21: #{tpu_custom_call.1} parent=5 // pred_check
        %p168 = pneg %p167
      $region22: #{tpu_custom_call.1} parent=5 // pred_check_branch
        %170 = sbr.rel (%p168) target = $region24
      $region23: #{tpu_custom_call.1} parent=5 // pred_region
        // Predicated region
        $region25: #{tpu_custom_call.1} parent=23 // pred_check
          %p171 = pneg %p50
        $region26: #{tpu_custom_call.1} parent=23 // pred_check_branch
          %173 = sbr.rel (%p171) target = $region28
        $region27: #{tpu_custom_call.1} parent=23 // pred_region
          %s174 = sand.u32 %s40, 1
          %s175 = scalar_lea.sflag [#allocation3], %s174
          %s176 = sand.u32 %s40, 1
          %s177 = smul.addr %s176, 128
          %s178 = scalar_lea.vmem [#allocation2], %s177
          %s179 = smul.u32 16, %s24
          %s181 = ssub.s32 2048, 2048
          %182 = vsyncadd %s175, %s181
          %s183 = smul.addr %s179, 2
          %s184 = smul.addr %s23, 32
          %s185 = sadd.s32 %s183, %s184
          %s186 = smul.addr %s185, 64
          %s187 = scalar_lea.hbm %s0, %s186
          %s188 = sshll.u32 %s178, 4
          %s189 = int_to_ptr.vmem [resolvable:$true] %s188
          %194 = dma.hbm_to_vmem [thread:$0]  %s187, 2048, %s189, %s175, 64, 64, 4
        $region28: #{tpu_custom_call.1} parent=23 // pred_fallthru
          _
      $region24: #{tpu_custom_call.1} parent=5 // pred_fallthru
        _
      %p195 = scmp.le.s32.totalorder 1, %s16
      %p196 = scmp.lt.s32.totalorder %s16, 3
      %p197 = pnand %p195, %p196
      %p198 = pneg %p197
      // Predicated region
      $region29: #{tpu_custom_call.1} parent=5 // pred_check
        _
      $region30: #{tpu_custom_call.1} parent=5 // pred_check_branch
        %200 = sbr.rel (%p197) target = $region32
      $region31: #{tpu_custom_call.1} parent=5 // pred_region
        %s201 = ssub.s32 %s16, 1
        %s202 = sand.u32 %s43, 1
        %s203 = scalar_lea.sflag [#allocation3], %s202
        %s204 = sand.u32 %s43, 1
        %s205 = smul.addr %s204, 128
        %s206 = scalar_lea.vmem [#allocation2], %s205
        // Predicated region
        $region33: #{tpu_custom_call.1} parent=31 // pred_check
          %p207 = pneg %p56
        $region34: #{tpu_custom_call.1} parent=31 // pred_check_branch
          %209 = sbr.rel (%p207) target = $region36
        $region35: #{tpu_custom_call.1} parent=31 // pred_region
          %210 = dma.done %s203, 2048
        $region36: #{tpu_custom_call.1} parent=31 // pred_fallthru
          _
        // Predicated region
        $region37: #{tpu_custom_call.1} parent=31 // pred_check
          %p211 = pneg %p77
        $region38: #{tpu_custom_call.1} parent=31 // pred_check_branch
          %213 = sbr.rel (%p211) target = $region40
        $region39: #{tpu_custom_call.1} parent=31 // pred_region
          %214 = dma.done [#allocation6], 128
        $region40: #{tpu_custom_call.1} parent=31 // pred_fallthru
          _
        // Predicated region
        $region41: #{tpu_custom_call.1} parent=31 // pred_check
          %p215 = pneg %p98
        $region42: #{tpu_custom_call.1} parent=31 // pred_check_branch
          %217 = sbr.rel (%p215) target = $region44
        $region43: #{tpu_custom_call.1} parent=31 // pred_region
          %218 = dma.done [#allocation6], 128
        $region44: #{tpu_custom_call.1} parent=31 // pred_fallthru
          _
        %s219 = sand.u32 %s43, 1
        %s220 = scalar_lea.sflag [#allocation3], %s219
        %s221 = sand.u32 %s43, 1
        %s222 = smul.addr %s221, 128
        %s223 = scalar_lea.vmem [#allocation2], %s222
        %p224 = pneg %p56
        %p225 = pneg %p53
        %p226 = pneg %p77
        %p227 = pneg %p74
        %p228 = pneg %p98
        %p229 = pneg %p95
        %p230 = pneg %p126
        %p231 = pneg %p123
        %s232 = sand.u32 %s113, 1
        %s233 = scalar_lea.sflag [#allocation4], %s232
        %s234 = sand.u32 %s113, 1
        %s235 = smul.addr %s234, 128
        %s236 = scalar_lea.vmem [#allocation8], %s235
        %s237 = smul.u32 16, %s26
        %s238 = smul.u32 16, %s26
        %v240 = vld [vmem:[%s206] sm:$0xf]
        %v241 = vld [vmem:[%s206 + $0x4] sm:$0xf]
        %v242 = vld [vmem:[%s206 + $0x8] sm:$0xf]
        %v243 = vld [vmem:[%s206 + $0xc] sm:$0xf]
        %v244 = vld [vmem:[%s206 + $0x10] sm:$0xf]
        %v245 = vld [vmem:[%s206 + $0x14] sm:$0xf]
        %v246 = vld [vmem:[%s206 + $0x18] sm:$0xf]
        %v247 = vld [vmem:[%s206 + $0x1c] sm:$0xf]
        %v248 = vld [vmem:[%s206 + $0x20] sm:$0xf]
        %v249 = vld [vmem:[%s206 + $0x24] sm:$0xf]
        %v250 = vld [vmem:[%s206 + $0x28] sm:$0xf]
        %v251 = vld [vmem:[%s206 + $0x2c] sm:$0xf]
        %v252 = vld [vmem:[%s206 + $0x30] sm:$0xf]
        %v253 = vld [vmem:[%s206 + $0x34] sm:$0xf]
        %v254 = vld [vmem:[%s206 + $0x38] sm:$0xf]
        %v255 = vld [vmem:[%s206 + $0x3c] sm:$0xf]
        %v256 = vld [vmem:[%s206 + $0x40] sm:$0xf]
        %v257 = vld [vmem:[%s206 + $0x44] sm:$0xf]
        %v258 = vld [vmem:[%s206 + $0x48] sm:$0xf]
        %v259 = vld [vmem:[%s206 + $0x4c] sm:$0xf]
        %v260 = vld [vmem:[%s206 + $0x50] sm:$0xf]
        %v261 = vld [vmem:[%s206 + $0x54] sm:$0xf]
        %v262 = vld [vmem:[%s206 + $0x58] sm:$0xf]
        %v263 = vld [vmem:[%s206 + $0x5c] sm:$0xf]
        %v264 = vld [vmem:[%s206 + $0x60] sm:$0xf]
        %v265 = vld [vmem:[%s206 + $0x64] sm:$0xf]
        %v266 = vld [vmem:[%s206 + $0x68] sm:$0xf]
        %v267 = vld [vmem:[%s206 + $0x6c] sm:$0xf]
        %v268 = vld [vmem:[%s206 + $0x70] sm:$0xf]
        %v269 = vld [vmem:[%s206 + $0x74] sm:$0xf]
        %v270 = vld [vmem:[%s206 + $0x78] sm:$0xf]
        %v271 = vld [vmem:[%s206 + $0x7c] sm:$0xf]
        %v272 = vld [vmem:[#allocation5] sm:$0xf]
        %v273 = vld [vmem:[#allocation5 + $0x4] sm:$0xf]
        %v276 = vunpack.c.l.b16 %v240
        %v277 = vunpack.c.l.b16 %v241
        %v278 = vpack.c.b16 %v277, %v276
        %v281 = vunpack.c.l.b16 %v272
        %v282 = vunpack.c.l.b16 %v273
        %v283 = vpack.c.b16 %v282, %v281
        %vm285 = vcmask 130048
        %v287 = vsel %vm285, %v278, 0
        %289 = vmatprep.subr.bf16.mxu0 0
        %290 = vmatpush1.bf16.msra.mxu0 0
        %291 = vmatprep.subr.bf16.mxu0 0
        %292 = vmatpush1.bf16.msra.mxu0 0
        %293 = vmatprep.subr.bf16.mxu0 0
        %294 = vmatpush1.bf16.msra.mxu0 0
        %295 = vmatprep.subr.bf16.mxu0 0
        %296 = vmatpush1.bf16.msra.mxu0 0
        %297 = vmatprep.subr.bf16.mxu0 0
        %298 = vmatpush1.bf16.msra.mxu0 0
        %299 = vmatprep.subr.bf16.mxu0 0
        %300 = vmatpush1.bf16.msra.mxu0 0
        %301 = vmatprep.subr.bf16.mxu0 0
        %302 = vmatpush1.bf16.msra.mxu0 0
        %303 = vmatprep.subr.bf16.mxu0 0
        %304 = vmatpush1.bf16.msra.mxu0 %v283
        %305 = vmatprep.subr.bf16.mxu0 0
        %306 = vmatpush2.bf16.msra.mxu0 0
        %307 = vmatprep.subr.bf16.mxu0 0
        %308 = vmatpush2.bf16.msra.mxu0 0
        %309 = vmatprep.subr.bf16.mxu0 0
        %310 = vmatpush2.bf16.msra.mxu0 0
        %311 = vmatprep.subr.bf16.mxu0 0
        %312 = vmatpush2.bf16.msra.mxu0 0
        %313 = vmatprep.subr.bf16.mxu0 0
        %314 = vmatpush2.bf16.msra.mxu0 0
        %315 = vmatprep.subr.bf16.mxu0 0
        %316 = vmatpush2.bf16.msra.mxu0 0
        %317 = vmatprep.subr.bf16.mxu0 0
        %318 = vmatpush2.bf16.msra.mxu0 0
        %319 = vmatprep.subr.bf16.mxu0 0
        %320 = vmatpush2.bf16.msra.mxu0 0
        %321 = vmatprep.mubr.bf16.mxu0 0
        %322 = vmatmul.mubr.bf16.gmra.mxu0 %v287
        %v323 = vpop.f32.mrf.mxu0
        %v324 = vadd.f32 0.0, %v323
        %v325 = vpop.f32.mrf.mxu0
        %v326 = vpop.f32.mrf.mxu0
        %v327 = vadd.f32 0.0, %v326
        %v328 = vpop.f32.mrf.mxu0
        %329 = vdwg.mxu0
        %v332 = vunpack.c.l.b16 %v242
        %v333 = vunpack.c.l.b16 %v243
        %v334 = vpack.c.b16 %v333, %v332
        %v336 = vsel %vm285, %v334, 0
        %338 = vmatprep.subr.bf16.mxu0 0
        %339 = vmatpush1.bf16.msra.mxu0 0
        %340 = vmatprep.subr.bf16.mxu0 0
        %341 = vmatpush1.bf16.msra.mxu0 0
        %342 = vmatprep.subr.bf16.mxu0 0
        %343 = vmatpush1.bf16.msra.mxu0 0
        %344 = vmatprep.subr.bf16.mxu0 0
        %345 = vmatpush1.bf16.msra.mxu0 0
        %346 = vmatprep.subr.bf16.mxu0 0
        %347 = vmatpush1.bf16.msra.mxu0 0
        %348 = vmatprep.subr.bf16.mxu0 0
        %349 = vmatpush1.bf16.msra.mxu0 0
        %350 = vmatprep.subr.bf16.mxu0 0
        %351 = vmatpush1.bf16.msra.mxu0 0
        %352 = vmatprep.subr.bf16.mxu0 0
        %353 = vmatpush1.bf16.msra.mxu0 %v283
        %354 = vmatprep.subr.bf16.mxu0 0
        %355 = vmatpush2.bf16.msra.mxu0 0
        %356 = vmatprep.subr.bf16.mxu0 0
        %357 = vmatpush2.bf16.msra.mxu0 0
        %358 = vmatprep.subr.bf16.mxu0 0
        %359 = vmatpush2.bf16.msra.mxu0 0
        %360 = vmatprep.subr.bf16.mxu0 0
        %361 = vmatpush2.bf16.msra.mxu0 0
        %362 = vmatprep.subr.bf16.mxu0 0
        %363 = vmatpush2.bf16.msra.mxu0 0
        %364 = vmatprep.subr.bf16.mxu0 0
        %365 = vmatpush2.bf16.msra.mxu0 0
        %366 = vmatprep.subr.bf16.mxu0 0
        %367 = vmatpush2.bf16.msra.mxu0 0
        %368 = vmatprep.subr.bf16.mxu0 0
        %369 = vmatpush2.bf16.msra.mxu0 0
        %370 = vmatprep.mubr.bf16.mxu0 0
        %371 = vmatmul.mubr.bf16.gmra.mxu0 %v336
        %v372 = vpop.f32.mrf.mxu0
        %v373 = vadd.f32 0.0, %v372
        %v374 = vpop.f32.mrf.mxu0
        %v375 = vpop.f32.mrf.mxu0
        %v376 = vadd.f32 0.0, %v375
        %v377 = vpop.f32.mrf.mxu0
        %378 = vdwg.mxu0
        %v381 = vunpack.c.l.b16 %v244
        %v382 = vunpack.c.l.b16 %v245
        %v383 = vpack.c.b16 %v382, %v381
        %v385 = vsel %vm285, %v383, 0
        %387 = vmatprep.subr.bf16.mxu0 0
        %388 = vmatpush1.bf16.msra.mxu0 0
        %389 = vmatprep.subr.bf16.mxu0 0
        %390 = vmatpush1.bf16.msra.mxu0 0
        %391 = vmatprep.subr.bf16.mxu0 0
        %392 = vmatpush1.bf16.msra.mxu0 0
        %393 = vmatprep.subr.bf16.mxu0 0
        %394 = vmatpush1.bf16.msra.mxu0 0
        %395 = vmatprep.subr.bf16.mxu0 0
        %396 = vmatpush1.bf16.msra.mxu0 0
        %397 = vmatprep.subr.bf16.mxu0 0
        %398 = vmatpush1.bf16.msra.mxu0 0
        %399 = vmatprep.subr.bf16.mxu0 0
        %400 = vmatpush1.bf16.msra.mxu0 0
        %401 = vmatprep.subr.bf16.mxu0 0
        %402 = vmatpush1.bf16.msra.mxu0 %v283
        %403 = vmatprep.subr.bf16.mxu0 0
        %404 = vmatpush2.bf16.msra.mxu0 0
        %405 = vmatprep.subr.bf16.mxu0 0
        %406 = vmatpush2.bf16.msra.mxu0 0
        %407 = vmatprep.subr.bf16.mxu0 0
        %408 = vmatpush2.bf16.msra.mxu0 0
        %409 = vmatprep.subr.bf16.mxu0 0
        %410 = vmatpush2.bf16.msra.mxu0 0
        %411 = vmatprep.subr.bf16.mxu0 0
        %412 = vmatpush2.bf16.msra.mxu0 0
        %413 = vmatprep.subr.bf16.mxu0 0
        %414 = vmatpush2.bf16.msra.mxu0 0
        %415 = vmatprep.subr.bf16.mxu0 0
        %416 = vmatpush2.bf16.msra.mxu0 0
        %417 = vmatprep.subr.bf16.mxu0 0
        %418 = vmatpush2.bf16.msra.mxu0 0
        %419 = vmatprep.mubr.bf16.mxu0 0
        %420 = vmatmul.mubr.bf16.gmra.mxu0 %v385
        %v421 = vpop.f32.mrf.mxu0
        %v422 = vadd.f32 0.0, %v421
        %v423 = vpop.f32.mrf.mxu0
        %v424 = vpop.f32.mrf.mxu0
        %v425 = vadd.f32 0.0, %v424
        %v426 = vpop.f32.mrf.mxu0
        %427 = vdwg.mxu0
        %v430 = vunpack.c.l.b16 %v246
        %v431 = vunpack.c.l.b16 %v247
        %v432 = vpack.c.b16 %v431, %v430
        %v434 = vsel %vm285, %v432, 0
        %436 = vmatprep.subr.bf16.mxu0 0
        %437 = vmatpush1.bf16.msra.mxu0 0
        %438 = vmatprep.subr.bf16.mxu0 0
        %439 = vmatpush1.bf16.msra.mxu0 0
        %440 = vmatprep.subr.bf16.mxu0 0
        %441 = vmatpush1.bf16.msra.mxu0 0
        %442 = vmatprep.subr.bf16.mxu0 0
        %443 = vmatpush1.bf16.msra.mxu0 0
        %444 = vmatprep.subr.bf16.mxu0 0
        %445 = vmatpush1.bf16.msra.mxu0 0
        %446 = vmatprep.subr.bf16.mxu0 0
        %447 = vmatpush1.bf16.msra.mxu0 0
        %448 = vmatprep.subr.bf16.mxu0 0
        %449 = vmatpush1.bf16.msra.mxu0 0
        %450 = vmatprep.subr.bf16.mxu0 0
        %451 = vmatpush1.bf16.msra.mxu0 %v283
        %452 = vmatprep.subr.bf16.mxu0 0
        %453 = vmatpush2.bf16.msra.mxu0 0
        %454 = vmatprep.subr.bf16.mxu0 0
        %455 = vmatpush2.bf16.msra.mxu0 0
        %456 = vmatprep.subr.bf16.mxu0 0
        %457 = vmatpush2.bf16.msra.mxu0 0
        %458 = vmatprep.subr.bf16.mxu0 0
        %459 = vmatpush2.bf16.msra.mxu0 0
        %460 = vmatprep.subr.bf16.mxu0 0
        %461 = vmatpush2.bf16.msra.mxu0 0
        %462 = vmatprep.subr.bf16.mxu0 0
        %463 = vmatpush2.bf16.msra.mxu0 0
        %464 = vmatprep.subr.bf16.mxu0 0
        %465 = vmatpush2.bf16.msra.mxu0 0
        %466 = vmatprep.subr.bf16.mxu0 0
        %467 = vmatpush2.bf16.msra.mxu0 0
        %468 = vmatprep.mubr.bf16.mxu0 0
        %469 = vmatmul.mubr.bf16.gmra.mxu0 %v434
        %v470 = vpop.f32.mrf.mxu0
        %v471 = vadd.f32 0.0, %v470
        %v472 = vpop.f32.mrf.mxu0
        %v473 = vpop.f32.mrf.mxu0
        %v474 = vadd.f32 0.0, %v473
        %v475 = vpop.f32.mrf.mxu0
        %476 = vdwg.mxu0
        %v479 = vunpack.c.l.b16 %v248
        %v480 = vunpack.c.l.b16 %v249
        %v481 = vpack.c.b16 %v480, %v479
        %v483 = vsel %vm285, %v481, 0
        %485 = vmatprep.subr.bf16.mxu0 0
        %486 = vmatpush1.bf16.msra.mxu0 0
        %487 = vmatprep.subr.bf16.mxu0 0
        %488 = vmatpush1.bf16.msra.mxu0 0
        %489 = vmatprep.subr.bf16.mxu0 0
        %490 = vmatpush1.bf16.msra.mxu0 0
        %491 = vmatprep.subr.bf16.mxu0 0
        %492 = vmatpush1.bf16.msra.mxu0 0
        %493 = vmatprep.subr.bf16.mxu0 0
        %494 = vmatpush1.bf16.msra.mxu0 0
        %495 = vmatprep.subr.bf16.mxu0 0
        %496 = vmatpush1.bf16.msra.mxu0 0
        %497 = vmatprep.subr.bf16.mxu0 0
        %498 = vmatpush1.bf16.msra.mxu0 0
        %499 = vmatprep.subr.bf16.mxu0 0
        %500 = vmatpush1.bf16.msra.mxu0 %v283
        %501 = vmatprep.subr.bf16.mxu0 0
        %502 = vmatpush2.bf16.msra.mxu0 0
        %503 = vmatprep.subr.bf16.mxu0 0
        %504 = vmatpush2.bf16.msra.mxu0 0
        %505 = vmatprep.subr.bf16.mxu0 0
        %506 = vmatpush2.bf16.msra.mxu0 0
        %507 = vmatprep.subr.bf16.mxu0 0
        %508 = vmatpush2.bf16.msra.mxu0 0
        %509 = vmatprep.subr.bf16.mxu0 0
        %510 = vmatpush2.bf16.msra.mxu0 0
        %511 = vmatprep.subr.bf16.mxu0 0
        %512 = vmatpush2.bf16.msra.mxu0 0
        %513 = vmatprep.subr.bf16.mxu0 0
        %514 = vmatpush2.bf16.msra.mxu0 0
        %515 = vmatprep.subr.bf16.mxu0 0
        %516 = vmatpush2.bf16.msra.mxu0 0
        %517 = vmatprep.mubr.bf16.mxu0 0
        %518 = vmatmul.mubr.bf16.gmra.mxu0 %v483
        %v519 = vpop.f32.mrf.mxu0
        %v520 = vadd.f32 0.0, %v519
        %v521 = vpop.f32.mrf.mxu0
        %v522 = vpop.f32.mrf.mxu0
        %v523 = vadd.f32 0.0, %v522
        %v524 = vpop.f32.mrf.mxu0
        %525 = vdwg.mxu0
        %v528 = vunpack.c.l.b16 %v250
        %v529 = vunpack.c.l.b16 %v251
        %v530 = vpack.c.b16 %v529, %v528
        %v532 = vsel %vm285, %v530, 0
        %534 = vmatprep.subr.bf16.mxu0 0
        %535 = vmatpush1.bf16.msra.mxu0 0
        %536 = vmatprep.subr.bf16.mxu0 0
        %537 = vmatpush1.bf16.msra.mxu0 0
        %538 = vmatprep.subr.bf16.mxu0 0
        %539 = vmatpush1.bf16.msra.mxu0 0
        %540 = vmatprep.subr.bf16.mxu0 0
        %541 = vmatpush1.bf16.msra.mxu0 0
        %542 = vmatprep.subr.bf16.mxu0 0
        %543 = vmatpush1.bf16.msra.mxu0 0
        %544 = vmatprep.subr.bf16.mxu0 0
        %545 = vmatpush1.bf16.msra.mxu0 0
        %546 = vmatprep.subr.bf16.mxu0 0
        %547 = vmatpush1.bf16.msra.mxu0 0
        %548 = vmatprep.subr.bf16.mxu0 0
        %549 = vmatpush1.bf16.msra.mxu0 %v283
        %550 = vmatprep.subr.bf16.mxu0 0
        %551 = vmatpush2.bf16.msra.mxu0 0
        %552 = vmatprep.subr.bf16.mxu0 0
        %553 = vmatpush2.bf16.msra.mxu0 0
        %554 = vmatprep.subr.bf16.mxu0 0
        %555 = vmatpush2.bf16.msra.mxu0 0
        %556 = vmatprep.subr.bf16.mxu0 0
        %557 = vmatpush2.bf16.msra.mxu0 0
        %558 = vmatprep.subr.bf16.mxu0 0
        %559 = vmatpush2.bf16.msra.mxu0 0
        %560 = vmatprep.subr.bf16.mxu0 0
        %561 = vmatpush2.bf16.msra.mxu0 0
        %562 = vmatprep.subr.bf16.mxu0 0
        %563 = vmatpush2.bf16.msra.mxu0 0
        %564 = vmatprep.subr.bf16.mxu0 0
        %565 = vmatpush2.bf16.msra.mxu0 0
        %566 = vmatprep.mubr.bf16.mxu0 0
        %567 = vmatmul.mubr.bf16.gmra.mxu0 %v532
        %v568 = vpop.f32.mrf.mxu0
        %v569 = vadd.f32 0.0, %v568
        %v570 = vpop.f32.mrf.mxu0
        %v571 = vpop.f32.mrf.mxu0
        %v572 = vadd.f32 0.0, %v571
        %v573 = vpop.f32.mrf.mxu0
        %574 = vdwg.mxu0
        %v577 = vunpack.c.l.b16 %v252
        %v578 = vunpack.c.l.b16 %v253
        %v579 = vpack.c.b16 %v578, %v577
        %v581 = vsel %vm285, %v579, 0
        %583 = vmatprep.subr.bf16.mxu0 0
        %584 = vmatpush1.bf16.msra.mxu0 0
        %585 = vmatprep.subr.bf16.mxu0 0
        %586 = vmatpush1.bf16.msra.mxu0 0
        %587 = vmatprep.subr.bf16.mxu0 0
        %588 = vmatpush1.bf16.msra.mxu0 0
        %589 = vmatprep.subr.bf16.mxu0 0
        %590 = vmatpush1.bf16.msra.mxu0 0
        %591 = vmatprep.subr.bf16.mxu0 0
        %592 = vmatpush1.bf16.msra.mxu0 0
        %593 = vmatprep.subr.bf16.mxu0 0
        %594 = vmatpush1.bf16.msra.mxu0 0
        %595 = vmatprep.subr.bf16.mxu0 0
        %596 = vmatpush1.bf16.msra.mxu0 0
        %597 = vmatprep.subr.bf16.mxu0 0
        %598 = vmatpush1.bf16.msra.mxu0 %v283
        %599 = vmatprep.subr.bf16.mxu0 0
        %600 = vmatpush2.bf16.msra.mxu0 0
        %601 = vmatprep.subr.bf16.mxu0 0
        %602 = vmatpush2.bf16.msra.mxu0 0
        %603 = vmatprep.subr.bf16.mxu0 0
        %604 = vmatpush2.bf16.msra.mxu0 0
        %605 = vmatprep.subr.bf16.mxu0 0
        %606 = vmatpush2.bf16.msra.mxu0 0
        %607 = vmatprep.subr.bf16.mxu0 0
        %608 = vmatpush2.bf16.msra.mxu0 0
        %609 = vmatprep.subr.bf16.mxu0 0
        %610 = vmatpush2.bf16.msra.mxu0 0
        %611 = vmatprep.subr.bf16.mxu0 0
        %612 = vmatpush2.bf16.msra.mxu0 0
        %613 = vmatprep.subr.bf16.mxu0 0
        %614 = vmatpush2.bf16.msra.mxu0 0
        %615 = vmatprep.mubr.bf16.mxu0 0
        %616 = vmatmul.mubr.bf16.gmra.mxu0 %v581
        %v617 = vpop.f32.mrf.mxu0
        %v618 = vadd.f32 0.0, %v617
        %v619 = vpop.f32.mrf.mxu0
        %v620 = vpop.f32.mrf.mxu0
        %v621 = vadd.f32 0.0, %v620
        %v622 = vpop.f32.mrf.mxu0
        %623 = vdwg.mxu0
        %v626 = vunpack.c.l.b16 %v254
        %v627 = vunpack.c.l.b16 %v255
        %v628 = vpack.c.b16 %v627, %v626
        %v630 = vsel %vm285, %v628, 0
        %632 = vmatprep.subr.bf16.mxu0 0
        %633 = vmatpush1.bf16.msra.mxu0 0
        %634 = vmatprep.subr.bf16.mxu0 0
        %635 = vmatpush1.bf16.msra.mxu0 0
        %636 = vmatprep.subr.bf16.mxu0 0
        %637 = vmatpush1.bf16.msra.mxu0 0
        %638 = vmatprep.subr.bf16.mxu0 0
        %639 = vmatpush1.bf16.msra.mxu0 0
        %640 = vmatprep.subr.bf16.mxu0 0
        %641 = vmatpush1.bf16.msra.mxu0 0
        %642 = vmatprep.subr.bf16.mxu0 0
        %643 = vmatpush1.bf16.msra.mxu0 0
        %644 = vmatprep.subr.bf16.mxu0 0
        %645 = vmatpush1.bf16.msra.mxu0 0
        %646 = vmatprep.subr.bf16.mxu0 0
        %647 = vmatpush1.bf16.msra.mxu0 %v283
        %648 = vmatprep.subr.bf16.mxu0 0
        %649 = vmatpush2.bf16.msra.mxu0 0
        %650 = vmatprep.subr.bf16.mxu0 0
        %651 = vmatpush2.bf16.msra.mxu0 0
        %652 = vmatprep.subr.bf16.mxu0 0
        %653 = vmatpush2.bf16.msra.mxu0 0
        %654 = vmatprep.subr.bf16.mxu0 0
        %655 = vmatpush2.bf16.msra.mxu0 0
        %656 = vmatprep.subr.bf16.mxu0 0
        %657 = vmatpush2.bf16.msra.mxu0 0
        %658 = vmatprep.subr.bf16.mxu0 0
        %659 = vmatpush2.bf16.msra.mxu0 0
        %660 = vmatprep.subr.bf16.mxu0 0
        %661 = vmatpush2.bf16.msra.mxu0 0
        %662 = vmatprep.subr.bf16.mxu0 0
        %663 = vmatpush2.bf16.msra.mxu0 0
        %664 = vmatprep.mubr.bf16.mxu0 0
        %665 = vmatmul.mubr.bf16.gmra.mxu0 %v630
        %v666 = vpop.f32.mrf.mxu0
        %v667 = vadd.f32 0.0, %v666
        %v668 = vpop.f32.mrf.mxu0
        %v669 = vpop.f32.mrf.mxu0
        %v670 = vadd.f32 0.0, %v669
        %v671 = vpop.f32.mrf.mxu0
        %672 = vdwg.mxu0
        %v675 = vunpack.c.l.b16 %v256
        %v676 = vunpack.c.l.b16 %v257
        %v677 = vpack.c.b16 %v676, %v675
        %v679 = vsel %vm285, %v677, 0
        %681 = vmatprep.subr.bf16.mxu0 0
        %682 = vmatpush1.bf16.msra.mxu0 0
        %683 = vmatprep.subr.bf16.mxu0 0
        %684 = vmatpush1.bf16.msra.mxu0 0
        %685 = vmatprep.subr.bf16.mxu0 0
        %686 = vmatpush1.bf16.msra.mxu0 0
        %687 = vmatprep.subr.bf16.mxu0 0
        %688 = vmatpush1.bf16.msra.mxu0 0
        %689 = vmatprep.subr.bf16.mxu0 0
        %690 = vmatpush1.bf16.msra.mxu0 0
        %691 = vmatprep.subr.bf16.mxu0 0
        %692 = vmatpush1.bf16.msra.mxu0 0
        %693 = vmatprep.subr.bf16.mxu0 0
        %694 = vmatpush1.bf16.msra.mxu0 0
        %695 = vmatprep.subr.bf16.mxu0 0
        %696 = vmatpush1.bf16.msra.mxu0 %v283
        %697 = vmatprep.subr.bf16.mxu0 0
        %698 = vmatpush2.bf16.msra.mxu0 0
        %699 = vmatprep.subr.bf16.mxu0 0
        %700 = vmatpush2.bf16.msra.mxu0 0
        %701 = vmatprep.subr.bf16.mxu0 0
        %702 = vmatpush2.bf16.msra.mxu0 0
        %703 = vmatprep.subr.bf16.mxu0 0
        %704 = vmatpush2.bf16.msra.mxu0 0
        %705 = vmatprep.subr.bf16.mxu0 0
        %706 = vmatpush2.bf16.msra.mxu0 0
        %707 = vmatprep.subr.bf16.mxu0 0
        %708 = vmatpush2.bf16.msra.mxu0 0
        %709 = vmatprep.subr.bf16.mxu0 0
        %710 = vmatpush2.bf16.msra.mxu0 0
        %711 = vmatprep.subr.bf16.mxu0 0
        %712 = vmatpush2.bf16.msra.mxu0 0
        %713 = vmatprep.mubr.bf16.mxu0 0
        %714 = vmatmul.mubr.bf16.gmra.mxu0 %v679
        %v715 = vpop.f32.mrf.mxu0
        %v716 = vadd.f32 0.0, %v715
        %v717 = vpop.f32.mrf.mxu0
        %v718 = vpop.f32.mrf.mxu0
        %v719 = vadd.f32 0.0, %v718
        %v720 = vpop.f32.mrf.mxu0
        %721 = vdwg.mxu0
        %v724 = vunpack.c.l.b16 %v258
        %v725 = vunpack.c.l.b16 %v259
        %v726 = vpack.c.b16 %v725, %v724
        %v728 = vsel %vm285, %v726, 0
        %730 = vmatprep.subr.bf16.mxu0 0
        %731 = vmatpush1.bf16.msra.mxu0 0
        %732 = vmatprep.subr.bf16.mxu0 0
        %733 = vmatpush1.bf16.msra.mxu0 0
        %734 = vmatprep.subr.bf16.mxu0 0
        %735 = vmatpush1.bf16.msra.mxu0 0
        %736 = vmatprep.subr.bf16.mxu0 0
        %737 = vmatpush1.bf16.msra.mxu0 0
        %738 = vmatprep.subr.bf16.mxu0 0
        %739 = vmatpush1.bf16.msra.mxu0 0
        %740 = vmatprep.subr.bf16.mxu0 0
        %741 = vmatpush1.bf16.msra.mxu0 0
        %742 = vmatprep.subr.bf16.mxu0 0
        %743 = vmatpush1.bf16.msra.mxu0 0
        %744 = vmatprep.subr.bf16.mxu0 0
        %745 = vmatpush1.bf16.msra.mxu0 %v283
        %746 = vmatprep.subr.bf16.mxu0 0
        %747 = vmatpush2.bf16.msra.mxu0 0
        %748 = vmatprep.subr.bf16.mxu0 0
        %749 = vmatpush2.bf16.msra.mxu0 0
        %750 = vmatprep.subr.bf16.mxu0 0
        %751 = vmatpush2.bf16.msra.mxu0 0
        %752 = vmatprep.subr.bf16.mxu0 0
        %753 = vmatpush2.bf16.msra.mxu0 0
        %754 = vmatprep.subr.bf16.mxu0 0
        %755 = vmatpush2.bf16.msra.mxu0 0
        %756 = vmatprep.subr.bf16.mxu0 0
        %757 = vmatpush2.bf16.msra.mxu0 0
        %758 = vmatprep.subr.bf16.mxu0 0
        %759 = vmatpush2.bf16.msra.mxu0 0
        %760 = vmatprep.subr.bf16.mxu0 0
        %761 = vmatpush2.bf16.msra.mxu0 0
        %762 = vmatprep.mubr.bf16.mxu0 0
        %763 = vmatmul.mubr.bf16.gmra.mxu0 %v728
        %v764 = vpop.f32.mrf.mxu0
        %v765 = vadd.f32 0.0, %v764
        %v766 = vpop.f32.mrf.mxu0
        %v767 = vpop.f32.mrf.mxu0
        %v768 = vadd.f32 0.0, %v767
        %v769 = vpop.f32.mrf.mxu0
        %770 = vdwg.mxu0
        %v773 = vunpack.c.l.b16 %v260
        %v774 = vunpack.c.l.b16 %v261
        %v775 = vpack.c.b16 %v774, %v773
        %v777 = vsel %vm285, %v775, 0
        %779 = vmatprep.subr.bf16.mxu0 0
        %780 = vmatpush1.bf16.msra.mxu0 0
        %781 = vmatprep.subr.bf16.mxu0 0
        %782 = vmatpush1.bf16.msra.mxu0 0
        %783 = vmatprep.subr.bf16.mxu0 0
        %784 = vmatpush1.bf16.msra.mxu0 0
        %785 = vmatprep.subr.bf16.mxu0 0
        %786 = vmatpush1.bf16.msra.mxu0 0
        %787 = vmatprep.subr.bf16.mxu0 0
        %788 = vmatpush1.bf16.msra.mxu0 0
        %789 = vmatprep.subr.bf16.mxu0 0
        %790 = vmatpush1.bf16.msra.mxu0 0
        %791 = vmatprep.subr.bf16.mxu0 0
        %792 = vmatpush1.bf16.msra.mxu0 0
        %793 = vmatprep.subr.bf16.mxu0 0
        %794 = vmatpush1.bf16.msra.mxu0 %v283
        %795 = vmatprep.subr.bf16.mxu0 0
        %796 = vmatpush2.bf16.msra.mxu0 0
        %797 = vmatprep.subr.bf16.mxu0 0
        %798 = vmatpush2.bf16.msra.mxu0 0
        %799 = vmatprep.subr.bf16.mxu0 0
        %800 = vmatpush2.bf16.msra.mxu0 0
        %801 = vmatprep.subr.bf16.mxu0 0
        %802 = vmatpush2.bf16.msra.mxu0 0
        %803 = vmatprep.subr.bf16.mxu0 0
        %804 = vmatpush2.bf16.msra.mxu0 0
        %805 = vmatprep.subr.bf16.mxu0 0
        %806 = vmatpush2.bf16.msra.mxu0 0
        %807 = vmatprep.subr.bf16.mxu0 0
        %808 = vmatpush2.bf16.msra.mxu0 0
        %809 = vmatprep.subr.bf16.mxu0 0
        %810 = vmatpush2.bf16.msra.mxu0 0
        %811 = vmatprep.mubr.bf16.mxu0 0
        %812 = vmatmul.mubr.bf16.gmra.mxu0 %v777
        %v813 = vpop.f32.mrf.mxu0
        %v814 = vadd.f32 0.0, %v813
        %v815 = vpop.f32.mrf.mxu0
        %v816 = vpop.f32.mrf.mxu0
        %v817 = vadd.f32 0.0, %v816
        %v818 = vpop.f32.mrf.mxu0
        %819 = vdwg.mxu0
        %v822 = vunpack.c.l.b16 %v262
        %v823 = vunpack.c.l.b16 %v263
        %v824 = vpack.c.b16 %v823, %v822
        %v826 = vsel %vm285, %v824, 0
        %828 = vmatprep.subr.bf16.mxu0 0
        %829 = vmatpush1.bf16.msra.mxu0 0
        %830 = vmatprep.subr.bf16.mxu0 0
        %831 = vmatpush1.bf16.msra.mxu0 0
        %832 = vmatprep.subr.bf16.mxu0 0
        %833 = vmatpush1.bf16.msra.mxu0 0
        %834 = vmatprep.subr.bf16.mxu0 0
        %835 = vmatpush1.bf16.msra.mxu0 0
        %836 = vmatprep.subr.bf16.mxu0 0
        %837 = vmatpush1.bf16.msra.mxu0 0
        %838 = vmatprep.subr.bf16.mxu0 0
        %839 = vmatpush1.bf16.msra.mxu0 0
        %840 = vmatprep.subr.bf16.mxu0 0
        %841 = vmatpush1.bf16.msra.mxu0 0
        %842 = vmatprep.subr.bf16.mxu0 0
        %843 = vmatpush1.bf16.msra.mxu0 %v283
        %844 = vmatprep.subr.bf16.mxu0 0
        %845 = vmatpush2.bf16.msra.mxu0 0
        %846 = vmatprep.subr.bf16.mxu0 0
        %847 = vmatpush2.bf16.msra.mxu0 0
        %848 = vmatprep.subr.bf16.mxu0 0
        %849 = vmatpush2.bf16.msra.mxu0 0
        %850 = vmatprep.subr.bf16.mxu0 0
        %851 = vmatpush2.bf16.msra.mxu0 0
        %852 = vmatprep.subr.bf16.mxu0 0
        %853 = vmatpush2.bf16.msra.mxu0 0
        %854 = vmatprep.subr.bf16.mxu0 0
        %855 = vmatpush2.bf16.msra.mxu0 0
        %856 = vmatprep.subr.bf16.mxu0 0
        %857 = vmatpush2.bf16.msra.mxu0 0
        %858 = vmatprep.subr.bf16.mxu0 0
        %859 = vmatpush2.bf16.msra.mxu0 0
        %860 = vmatprep.mubr.bf16.mxu0 0
        %861 = vmatmul.mubr.bf16.gmra.mxu0 %v826
        %v862 = vpop.f32.mrf.mxu0
        %v863 = vadd.f32 0.0, %v862
        %v864 = vpop.f32.mrf.mxu0
        %v865 = vpop.f32.mrf.mxu0
        %v866 = vadd.f32 0.0, %v865
        %v867 = vpop.f32.mrf.mxu0
        %868 = vdwg.mxu0
        %v871 = vunpack.c.l.b16 %v264
        %v872 = vunpack.c.l.b16 %v265
        %v873 = vpack.c.b16 %v872, %v871
        %v875 = vsel %vm285, %v873, 0
        %877 = vmatprep.subr.bf16.mxu0 0
        %878 = vmatpush1.bf16.msra.mxu0 0
        %879 = vmatprep.subr.bf16.mxu0 0
        %880 = vmatpush1.bf16.msra.mxu0 0
        %881 = vmatprep.subr.bf16.mxu0 0
        %882 = vmatpush1.bf16.msra.mxu0 0
        %883 = vmatprep.subr.bf16.mxu0 0
        %884 = vmatpush1.bf16.msra.mxu0 0
        %885 = vmatprep.subr.bf16.mxu0 0
        %886 = vmatpush1.bf16.msra.mxu0 0
        %887 = vmatprep.subr.bf16.mxu0 0
        %888 = vmatpush1.bf16.msra.mxu0 0
        %889 = vmatprep.subr.bf16.mxu0 0
        %890 = vmatpush1.bf16.msra.mxu0 0
        %891 = vmatprep.subr.bf16.mxu0 0
        %892 = vmatpush1.bf16.msra.mxu0 %v283
        %893 = vmatprep.subr.bf16.mxu0 0
        %894 = vmatpush2.bf16.msra.mxu0 0
        %895 = vmatprep.subr.bf16.mxu0 0
        %896 = vmatpush2.bf16.msra.mxu0 0
        %897 = vmatprep.subr.bf16.mxu0 0
        %898 = vmatpush2.bf16.msra.mxu0 0
        %899 = vmatprep.subr.bf16.mxu0 0
        %900 = vmatpush2.bf16.msra.mxu0 0
        %901 = vmatprep.subr.bf16.mxu0 0
        %902 = vmatpush2.bf16.msra.mxu0 0
        %903 = vmatprep.subr.bf16.mxu0 0
        %904 = vmatpush2.bf16.msra.mxu0 0
        %905 = vmatprep.subr.bf16.mxu0 0
        %906 = vmatpush2.bf16.msra.mxu0 0
        %907 = vmatprep.subr.bf16.mxu0 0
        %908 = vmatpush2.bf16.msra.mxu0 0
        %909 = vmatprep.mubr.bf16.mxu0 0
        %910 = vmatmul.mubr.bf16.gmra.mxu0 %v875
        %v911 = vpop.f32.mrf.mxu0
        %v912 = vadd.f32 0.0, %v911
        %v913 = vpop.f32.mrf.mxu0
        %v914 = vpop.f32.mrf.mxu0
        %v915 = vadd.f32 0.0, %v914
        %v916 = vpop.f32.mrf.mxu0
        %917 = vdwg.mxu0
        %v920 = vunpack.c.l.b16 %v266
        %v921 = vunpack.c.l.b16 %v267
        %v922 = vpack.c.b16 %v921, %v920
        %v924 = vsel %vm285, %v922, 0
        %926 = vmatprep.subr.bf16.mxu0 0
        %927 = vmatpush1.bf16.msra.mxu0 0
        %928 = vmatprep.subr.bf16.mxu0 0
        %929 = vmatpush1.bf16.msra.mxu0 0
        %930 = vmatprep.subr.bf16.mxu0 0
        %931 = vmatpush1.bf16.msra.mxu0 0
        %932 = vmatprep.subr.bf16.mxu0 0
        %933 = vmatpush1.bf16.msra.mxu0 0
        %934 = vmatprep.subr.bf16.mxu0 0
        %935 = vmatpush1.bf16.msra.mxu0 0
        %936 = vmatprep.subr.bf16.mxu0 0
        %937 = vmatpush1.bf16.msra.mxu0 0
        %938 = vmatprep.subr.bf16.mxu0 0
        %939 = vmatpush1.bf16.msra.mxu0 0
        %940 = vmatprep.subr.bf16.mxu0 0
        %941 = vmatpush1.bf16.msra.mxu0 %v283
        %942 = vmatprep.subr.bf16.mxu0 0
        %943 = vmatpush2.bf16.msra.mxu0 0
        %944 = vmatprep.subr.bf16.mxu0 0
        %945 = vmatpush2.bf16.msra.mxu0 0
        %946 = vmatprep.subr.bf16.mxu0 0
        %947 = vmatpush2.bf16.msra.mxu0 0
        %948 = vmatprep.subr.bf16.mxu0 0
        %949 = vmatpush2.bf16.msra.mxu0 0
        %950 = vmatprep.subr.bf16.mxu0 0
        %951 = vmatpush2.bf16.msra.mxu0 0
        %952 = vmatprep.subr.bf16.mxu0 0
        %953 = vmatpush2.bf16.msra.mxu0 0
        %954 = vmatprep.subr.bf16.mxu0 0
        %955 = vmatpush2.bf16.msra.mxu0 0
        %956 = vmatprep.subr.bf16.mxu0 0
        %957 = vmatpush2.bf16.msra.mxu0 0
        %958 = vmatprep.mubr.bf16.mxu0 0
        %959 = vmatmul.mubr.bf16.gmra.mxu0 %v924
        %v960 = vpop.f32.mrf.mxu0
        %v961 = vadd.f32 0.0, %v960
        %v962 = vpop.f32.mrf.mxu0
        %v963 = vpop.f32.mrf.mxu0
        %v964 = vadd.f32 0.0, %v963
        %v965 = vpop.f32.mrf.mxu0
        %966 = vdwg.mxu0
        %v969 = vunpack.c.l.b16 %v268
        %v970 = vunpack.c.l.b16 %v269
        %v971 = vpack.c.b16 %v970, %v969
        %v973 = vsel %vm285, %v971, 0
        %975 = vmatprep.subr.bf16.mxu0 0
        %976 = vmatpush1.bf16.msra.mxu0 0
        %977 = vmatprep.subr.bf16.mxu0 0
        %978 = vmatpush1.bf16.msra.mxu0 0
        %979 = vmatprep.subr.bf16.mxu0 0
        %980 = vmatpush1.bf16.msra.mxu0 0
        %981 = vmatprep.subr.bf16.mxu0 0
        %982 = vmatpush1.bf16.msra.mxu0 0
        %983 = vmatprep.subr.bf16.mxu0 0
        %984 = vmatpush1.bf16.msra.mxu0 0
        %985 = vmatprep.subr.bf16.mxu0 0
        %986 = vmatpush1.bf16.msra.mxu0 0
        %987 = vmatprep.subr.bf16.mxu0 0
        %988 = vmatpush1.bf16.msra.mxu0 0
        %989 = vmatprep.subr.bf16.mxu0 0
        %990 = vmatpush1.bf16.msra.mxu0 %v283
        %991 = vmatprep.subr.bf16.mxu0 0
        %992 = vmatpush2.bf16.msra.mxu0 0
        %993 = vmatprep.subr.bf16.mxu0 0
        %994 = vmatpush2.bf16.msra.mxu0 0
        %995 = vmatprep.subr.bf16.mxu0 0
        %996 = vmatpush2.bf16.msra.mxu0 0
        %997 = vmatprep.subr.bf16.mxu0 0
        %998 = vmatpush2.bf16.msra.mxu0 0
        %999 = vmatprep.subr.bf16.mxu0 0
        %1000 = vmatpush2.bf16.msra.mxu0 0
        %1001 = vmatprep.subr.bf16.mxu0 0
        %1002 = vmatpush2.bf16.msra.mxu0 0
        %1003 = vmatprep.subr.bf16.mxu0 0
        %1004 = vmatpush2.bf16.msra.mxu0 0
        %1005 = vmatprep.subr.bf16.mxu0 0
        %1006 = vmatpush2.bf16.msra.mxu0 0
        %1007 = vmatprep.mubr.bf16.mxu0 0
        %1008 = vmatmul.mubr.bf16.gmra.mxu0 %v973
        %v1009 = vpop.f32.mrf.mxu0
        %v1010 = vadd.f32 0.0, %v1009
        %v1011 = vpop.f32.mrf.mxu0
        %v1012 = vpop.f32.mrf.mxu0
        %v1013 = vadd.f32 0.0, %v1012
        %v1014 = vpop.f32.mrf.mxu0
        %1015 = vdwg.mxu0
        %v1018 = vunpack.c.l.b16 %v270
        %v1019 = vunpack.c.l.b16 %v271
        %v1020 = vpack.c.b16 %v1019, %v1018
        %v1022 = vsel %vm285, %v1020, 0
        %1024 = vmatprep.subr.bf16.mxu0 0
        %1025 = vmatpush1.bf16.msra.mxu0 0
        %1026 = vmatprep.subr.bf16.mxu0 0
        %1027 = vmatpush1.bf16.msra.mxu0 0
        %1028 = vmatprep.subr.bf16.mxu0 0
        %1029 = vmatpush1.bf16.msra.mxu0 0
        %1030 = vmatprep.subr.bf16.mxu0 0
        %1031 = vmatpush1.bf16.msra.mxu0 0
        %1032 = vmatprep.subr.bf16.mxu0 0
        %1033 = vmatpush1.bf16.msra.mxu0 0
        %1034 = vmatprep.subr.bf16.mxu0 0
        %1035 = vmatpush1.bf16.msra.mxu0 0
        %1036 = vmatprep.subr.bf16.mxu0 0
        %1037 = vmatpush1.bf16.msra.mxu0 0
        %1038 = vmatprep.subr.bf16.mxu0 0
        %1039 = vmatpush1.bf16.msra.mxu0 %v283
        %1040 = vmatprep.subr.bf16.mxu0 0
        %1041 = vmatpush2.bf16.msra.mxu0 0
        %1042 = vmatprep.subr.bf16.mxu0 0
        %1043 = vmatpush2.bf16.msra.mxu0 0
        %1044 = vmatprep.subr.bf16.mxu0 0
        %1045 = vmatpush2.bf16.msra.mxu0 0
        %1046 = vmatprep.subr.bf16.mxu0 0
        %1047 = vmatpush2.bf16.msra.mxu0 0
        %1048 = vmatprep.subr.bf16.mxu0 0
        %1049 = vmatpush2.bf16.msra.mxu0 0
        %1050 = vmatprep.subr.bf16.mxu0 0
        %1051 = vmatpush2.bf16.msra.mxu0 0
        %1052 = vmatprep.subr.bf16.mxu0 0
        %1053 = vmatpush2.bf16.msra.mxu0 0
        %1054 = vmatprep.subr.bf16.mxu0 0
        %1055 = vmatpush2.bf16.msra.mxu0 0
        %1056 = vmatprep.mubr.bf16.mxu0 0
        %1057 = vmatmul.mubr.bf16.gmra.mxu0 %v1022
        %v1058 = vpop.f32.mrf.mxu0
        %v1059 = vadd.f32 0.0, %v1058
        %v1060 = vpop.f32.mrf.mxu0
        %v1061 = vpop.f32.mrf.mxu0
        %v1062 = vadd.f32 0.0, %v1061
        %v1063 = vpop.f32.mrf.mxu0
        %1064 = vdwg.mxu0
        %v1065 = vld [vmem:[#allocation7] sm:$0xf]
        %v1066 = vld [vmem:[#allocation7 + $0x4] sm:$0xf]
        %v1067 = vpack.c.bf16 %v327, %v324
        %v1068 = vpack.c.bf16 %v376, %v373
        %v1069 = vpack.c.bf16 %v425, %v422
        %v1070 = vpack.c.bf16 %v474, %v471
        %v1071 = vpack.c.bf16 %v523, %v520
        %v1072 = vpack.c.bf16 %v572, %v569
        %v1073 = vpack.c.bf16 %v621, %v618
        %v1074 = vpack.c.bf16 %v670, %v667
        %v1075 = vpack.c.bf16 %v719, %v716
        %v1076 = vpack.c.bf16 %v768, %v765
        %v1077 = vpack.c.bf16 %v817, %v814
        %v1078 = vpack.c.bf16 %v866, %v863
        %v1079 = vpack.c.bf16 %v915, %v912
        %v1080 = vpack.c.bf16 %v964, %v961
        %v1081 = vpack.c.bf16 %v1013, %v1010
        %v1082 = vpack.c.bf16 %v1062, %v1059
        %v1085 = vunpack.c.l.b16 %v1065
        %v1086 = vunpack.c.l.b16 %v1066
        %v1087 = vpack.c.b16 %v1086, %v1085
        %v1089 = vsel %vm285, %v1087, 0
        %1091 = vmatprep.subr.bf16.mxu0 0
        %1092 = vmatpush1.bf16.msra.mxu0 0
        %1093 = vmatprep.subr.bf16.mxu0 0
        %1094 = vmatpush1.bf16.msra.mxu0 0
        %1095 = vmatprep.subr.bf16.mxu0 0
        %1096 = vmatpush1.bf16.msra.mxu0 0
        %1097 = vmatprep.subr.bf16.mxu0 0
        %1098 = vmatpush1.bf16.msra.mxu0 0
        %1099 = vmatprep.subr.bf16.mxu0 0
        %1100 = vmatpush1.bf16.msra.mxu0 0
        %1101 = vmatprep.subr.bf16.mxu0 0
        %1102 = vmatpush1.bf16.msra.mxu0 0
        %1103 = vmatprep.subr.bf16.mxu0 0
        %1104 = vmatpush1.bf16.msra.mxu0 0
        %1105 = vmatprep.subr.bf16.mxu0 0
        %1106 = vmatpush1.bf16.msra.mxu0 %v1067
        %1107 = vmatprep.subr.bf16.mxu0 0
        %1108 = vmatpush2.bf16.msra.mxu0 0
        %1109 = vmatprep.subr.bf16.mxu0 0
        %1110 = vmatpush2.bf16.msra.mxu0 0
        %1111 = vmatprep.subr.bf16.mxu0 0
        %1112 = vmatpush2.bf16.msra.mxu0 0
        %1113 = vmatprep.subr.bf16.mxu0 0
        %1114 = vmatpush2.bf16.msra.mxu0 0
        %1115 = vmatprep.subr.bf16.mxu0 0
        %1116 = vmatpush2.bf16.msra.mxu0 0
        %1117 = vmatprep.subr.bf16.mxu0 0
        %1118 = vmatpush2.bf16.msra.mxu0 0
        %1119 = vmatprep.subr.bf16.mxu0 0
        %1120 = vmatpush2.bf16.msra.mxu0 0
        %1121 = vmatprep.subr.bf16.mxu0 0
        %1122 = vmatpush2.bf16.msra.mxu0 0
        %1123 = vmatprep.mubr.bf16.mxu0 0
        %1124 = vmatmul.mubr.bf16.gmra.mxu0 %v1089
        %v1125 = vpop.f32.mrf.mxu0
        %v1126 = vadd.f32 0.0, %v1125
        %v1127 = vpop.f32.mrf.mxu0
        %v1128 = vpop.f32.mrf.mxu0
        %v1129 = vadd.f32 0.0, %v1128
        %v1130 = vpop.f32.mrf.mxu0
        %1131 = vdwg.mxu0
        %1132 = vmatprep.subr.bf16.mxu0 0
        %1133 = vmatpush1.bf16.msra.mxu0 0
        %1134 = vmatprep.subr.bf16.mxu0 0
        %1135 = vmatpush1.bf16.msra.mxu0 0
        %1136 = vmatprep.subr.bf16.mxu0 0
        %1137 = vmatpush1.bf16.msra.mxu0 0
        %1138 = vmatprep.subr.bf16.mxu0 0
        %1139 = vmatpush1.bf16.msra.mxu0 0
        %1140 = vmatprep.subr.bf16.mxu0 0
        %1141 = vmatpush1.bf16.msra.mxu0 0
        %1142 = vmatprep.subr.bf16.mxu0 0
        %1143 = vmatpush1.bf16.msra.mxu0 0
        %1144 = vmatprep.subr.bf16.mxu0 0
        %1145 = vmatpush1.bf16.msra.mxu0 0
        %1146 = vmatprep.subr.bf16.mxu0 0
        %1147 = vmatpush1.bf16.msra.mxu0 %v1068
        %1148 = vmatprep.subr.bf16.mxu0 0
        %1149 = vmatpush2.bf16.msra.mxu0 0
        %1150 = vmatprep.subr.bf16.mxu0 0
        %1151 = vmatpush2.bf16.msra.mxu0 0
        %1152 = vmatprep.subr.bf16.mxu0 0
        %1153 = vmatpush2.bf16.msra.mxu0 0
        %1154 = vmatprep.subr.bf16.mxu0 0
        %1155 = vmatpush2.bf16.msra.mxu0 0
        %1156 = vmatprep.subr.bf16.mxu0 0
        %1157 = vmatpush2.bf16.msra.mxu0 0
        %1158 = vmatprep.subr.bf16.mxu0 0
        %1159 = vmatpush2.bf16.msra.mxu0 0
        %1160 = vmatprep.subr.bf16.mxu0 0
        %1161 = vmatpush2.bf16.msra.mxu0 0
        %1162 = vmatprep.subr.bf16.mxu0 0
        %1163 = vmatpush2.bf16.msra.mxu0 0
        %1164 = vmatprep.mubr.bf16.mxu0 0
        %1165 = vmatmul.mubr.bf16.gmra.mxu0 %v1089
        %v1166 = vpop.f32.mrf.mxu0
        %v1167 = vadd.f32 0.0, %v1166
        %v1168 = vpop.f32.mrf.mxu0
        %v1169 = vpop.f32.mrf.mxu0
        %v1170 = vadd.f32 0.0, %v1169
        %v1171 = vpop.f32.mrf.mxu0
        %1172 = vdwg.mxu0
        %1173 = vmatprep.subr.bf16.mxu0 0
        %1174 = vmatpush1.bf16.msra.mxu0 0
        %1175 = vmatprep.subr.bf16.mxu0 0
        %1176 = vmatpush1.bf16.msra.mxu0 0
        %1177 = vmatprep.subr.bf16.mxu0 0
        %1178 = vmatpush1.bf16.msra.mxu0 0
        %1179 = vmatprep.subr.bf16.mxu0 0
        %1180 = vmatpush1.bf16.msra.mxu0 0
        %1181 = vmatprep.subr.bf16.mxu0 0
        %1182 = vmatpush1.bf16.msra.mxu0 0
        %1183 = vmatprep.subr.bf16.mxu0 0
        %1184 = vmatpush1.bf16.msra.mxu0 0
        %1185 = vmatprep.subr.bf16.mxu0 0
        %1186 = vmatpush1.bf16.msra.mxu0 0
        %1187 = vmatprep.subr.bf16.mxu0 0
        %1188 = vmatpush1.bf16.msra.mxu0 %v1069
        %1189 = vmatprep.subr.bf16.mxu0 0
        %1190 = vmatpush2.bf16.msra.mxu0 0
        %1191 = vmatprep.subr.bf16.mxu0 0
        %1192 = vmatpush2.bf16.msra.mxu0 0
        %1193 = vmatprep.subr.bf16.mxu0 0
        %1194 = vmatpush2.bf16.msra.mxu0 0
        %1195 = vmatprep.subr.bf16.mxu0 0
        %1196 = vmatpush2.bf16.msra.mxu0 0
        %1197 = vmatprep.subr.bf16.mxu0 0
        %1198 = vmatpush2.bf16.msra.mxu0 0
        %1199 = vmatprep.subr.bf16.mxu0 0
        %1200 = vmatpush2.bf16.msra.mxu0 0
        %1201 = vmatprep.subr.bf16.mxu0 0
        %1202 = vmatpush2.bf16.msra.mxu0 0
        %1203 = vmatprep.subr.bf16.mxu0 0
        %1204 = vmatpush2.bf16.msra.mxu0 0
        %1205 = vmatprep.mubr.bf16.mxu0 0
        %1206 = vmatmul.mubr.bf16.gmra.mxu0 %v1089
        %v1207 = vpop.f32.mrf.mxu0
        %v1208 = vadd.f32 0.0, %v1207
        %v1209 = vpop.f32.mrf.mxu0
        %v1210 = vpop.f32.mrf.mxu0
        %v1211 = vadd.f32 0.0, %v1210
        %v1212 = vpop.f32.mrf.mxu0
        %1213 = vdwg.mxu0
        %1214 = vmatprep.subr.bf16.mxu0 0
        %1215 = vmatpush1.bf16.msra.mxu0 0
        %1216 = vmatprep.subr.bf16.mxu0 0
        %1217 = vmatpush1.bf16.msra.mxu0 0
        %1218 = vmatprep.subr.bf16.mxu0 0
        %1219 = vmatpush1.bf16.msra.mxu0 0
        %1220 = vmatprep.subr.bf16.mxu0 0
        %1221 = vmatpush1.bf16.msra.mxu0 0
        %1222 = vmatprep.subr.bf16.mxu0 0
        %1223 = vmatpush1.bf16.msra.mxu0 0
        %1224 = vmatprep.subr.bf16.mxu0 0
        %1225 = vmatpush1.bf16.msra.mxu0 0
        %1226 = vmatprep.subr.bf16.mxu0 0
        %1227 = vmatpush1.bf16.msra.mxu0 0
        %1228 = vmatprep.subr.bf16.mxu0 0
        %1229 = vmatpush1.bf16.msra.mxu0 %v1070
        %1230 = vmatprep.subr.bf16.mxu0 0
        %1231 = vmatpush2.bf16.msra.mxu0 0
        %1232 = vmatprep.subr.bf16.mxu0 0
        %1233 = vmatpush2.bf16.msra.mxu0 0
        %1234 = vmatprep.subr.bf16.mxu0 0
        %1235 = vmatpush2.bf16.msra.mxu0 0
        %1236 = vmatprep.subr.bf16.mxu0 0
        %1237 = vmatpush2.bf16.msra.mxu0 0
        %1238 = vmatprep.subr.bf16.mxu0 0
        %1239 = vmatpush2.bf16.msra.mxu0 0
        %1240 = vmatprep.subr.bf16.mxu0 0
        %1241 = vmatpush2.bf16.msra.mxu0 0
        %1242 = vmatprep.subr.bf16.mxu0 0
        %1243 = vmatpush2.bf16.msra.mxu0 0
        %1244 = vmatprep.subr.bf16.mxu0 0
        %1245 = vmatpush2.bf16.msra.mxu0 0
        %1246 = vmatprep.mubr.bf16.mxu0 0
        %1247 = vmatmul.mubr.bf16.gmra.mxu0 %v1089
        %v1248 = vpop.f32.mrf.mxu0
        %v1249 = vadd.f32 0.0, %v1248
        %v1250 = vpop.f32.mrf.mxu0
        %v1251 = vpop.f32.mrf.mxu0
        %v1252 = vadd.f32 0.0, %v1251
        %v1253 = vpop.f32.mrf.mxu0
        %1254 = vdwg.mxu0
        %1255 = vmatprep.subr.bf16.mxu0 0
        %1256 = vmatpush1.bf16.msra.mxu0 0
        %1257 = vmatprep.subr.bf16.mxu0 0
        %1258 = vmatpush1.bf16.msra.mxu0 0
        %1259 = vmatprep.subr.bf16.mxu0 0
        %1260 = vmatpush1.bf16.msra.mxu0 0
        %1261 = vmatprep.subr.bf16.mxu0 0
        %1262 = vmatpush1.bf16.msra.mxu0 0
        %1263 = vmatprep.subr.bf16.mxu0 0
        %1264 = vmatpush1.bf16.msra.mxu0 0
        %1265 = vmatprep.subr.bf16.mxu0 0
        %1266 = vmatpush1.bf16.msra.mxu0 0
        %1267 = vmatprep.subr.bf16.mxu0 0
        %1268 = vmatpush1.bf16.msra.mxu0 0
        %1269 = vmatprep.subr.bf16.mxu0 0
        %1270 = vmatpush1.bf16.msra.mxu0 %v1071
        %1271 = vmatprep.subr.bf16.mxu0 0
        %1272 = vmatpush2.bf16.msra.mxu0 0
        %1273 = vmatprep.subr.bf16.mxu0 0
        %1274 = vmatpush2.bf16.msra.mxu0 0
        %1275 = vmatprep.subr.bf16.mxu0 0
        %1276 = vmatpush2.bf16.msra.mxu0 0
        %1277 = vmatprep.subr.bf16.mxu0 0
        %1278 = vmatpush2.bf16.msra.mxu0 0
        %1279 = vmatprep.subr.bf16.mxu0 0
        %1280 = vmatpush2.bf16.msra.mxu0 0
        %1281 = vmatprep.subr.bf16.mxu0 0
        %1282 = vmatpush2.bf16.msra.mxu0 0
        %1283 = vmatprep.subr.bf16.mxu0 0
        %1284 = vmatpush2.bf16.msra.mxu0 0
        %1285 = vmatprep.subr.bf16.mxu0 0
        %1286 = vmatpush2.bf16.msra.mxu0 0
        %1287 = vmatprep.mubr.bf16.mxu0 0
        %1288 = vmatmul.mubr.bf16.gmra.mxu0 %v1089
        %v1289 = vpop.f32.mrf.mxu0
        %v1290 = vadd.f32 0.0, %v1289
        %v1291 = vpop.f32.mrf.mxu0
        %v1292 = vpop.f32.mrf.mxu0
        %v1293 = vadd.f32 0.0, %v1292
        %v1294 = vpop.f32.mrf.mxu0
        %1295 = vdwg.mxu0
        %1296 = vmatprep.subr.bf16.mxu0 0
        %1297 = vmatpush1.bf16.msra.mxu0 0
        %1298 = vmatprep.subr.bf16.mxu0 0
        %1299 = vmatpush1.bf16.msra.mxu0 0
        %1300 = vmatprep.subr.bf16.mxu0 0
        %1301 = vmatpush1.bf16.msra.mxu0 0
        %1302 = vmatprep.subr.bf16.mxu0 0
        %1303 = vmatpush1.bf16.msra.mxu0 0
        %1304 = vmatprep.subr.bf16.mxu0 0
        %1305 = vmatpush1.bf16.msra.mxu0 0
        %1306 = vmatprep.subr.bf16.mxu0 0
        %1307 = vmatpush1.bf16.msra.mxu0 0
        %1308 = vmatprep.subr.bf16.mxu0 0
        %1309 = vmatpush1.bf16.msra.mxu0 0
        %1310 = vmatprep.subr.bf16.mxu0 0
        %1311 = vmatpush1.bf16.msra.mxu0 %v1072
        %1312 = vmatprep.subr.bf16.mxu0 0
        %1313 = vmatpush2.bf16.msra.mxu0 0
        %1314 = vmatprep.subr.bf16.mxu0 0
        %1315 = vmatpush2.bf16.msra.mxu0 0
        %1316 = vmatprep.subr.bf16.mxu0 0
        %1317 = vmatpush2.bf16.msra.mxu0 0
        %1318 = vmatprep.subr.bf16.mxu0 0
        %1319 = vmatpush2.bf16.msra.mxu0 0
        %1320 = vmatprep.subr.bf16.mxu0 0
        %1321 = vmatpush2.bf16.msra.mxu0 0
        %1322 = vmatprep.subr.bf16.mxu0 0
        %1323 = vmatpush2.bf16.msra.mxu0 0
        %1324 = vmatprep.subr.bf16.mxu0 0
        %1325 = vmatpush2.bf16.msra.mxu0 0
        %1326 = vmatprep.subr.bf16.mxu0 0
        %1327 = vmatpush2.bf16.msra.mxu0 0
        %1328 = vmatprep.mubr.bf16.mxu0 0
        %1329 = vmatmul.mubr.bf16.gmra.mxu0 %v1089
        %v1330 = vpop.f32.mrf.mxu0
        %v1331 = vadd.f32 0.0, %v1330
        %v1332 = vpop.f32.mrf.mxu0
        %v1333 = vpop.f32.mrf.mxu0
        %v1334 = vadd.f32 0.0, %v1333
        %v1335 = vpop.f32.mrf.mxu0
        %1336 = vdwg.mxu0
        %1337 = vmatprep.subr.bf16.mxu0 0
        %1338 = vmatpush1.bf16.msra.mxu0 0
        %1339 = vmatprep.subr.bf16.mxu0 0
        %1340 = vmatpush1.bf16.msra.mxu0 0
        %1341 = vmatprep.subr.bf16.mxu0 0
        %1342 = vmatpush1.bf16.msra.mxu0 0
        %1343 = vmatprep.subr.bf16.mxu0 0
        %1344 = vmatpush1.bf16.msra.mxu0 0
        %1345 = vmatprep.subr.bf16.mxu0 0
        %1346 = vmatpush1.bf16.msra.mxu0 0
        %1347 = vmatprep.subr.bf16.mxu0 0
        %1348 = vmatpush1.bf16.msra.mxu0 0
        %1349 = vmatprep.subr.bf16.mxu0 0
        %1350 = vmatpush1.bf16.msra.mxu0 0
        %1351 = vmatprep.subr.bf16.mxu0 0
        %1352 = vmatpush1.bf16.msra.mxu0 %v1073
        %1353 = vmatprep.subr.bf16.mxu0 0
        %1354 = vmatpush2.bf16.msra.mxu0 0
        %1355 = vmatprep.subr.bf16.mxu0 0
        %1356 = vmatpush2.bf16.msra.mxu0 0
        %1357 = vmatprep.subr.bf16.mxu0 0
        %1358 = vmatpush2.bf16.msra.mxu0 0
        %1359 = vmatprep.subr.bf16.mxu0 0
        %1360 = vmatpush2.bf16.msra.mxu0 0
        %1361 = vmatprep.subr.bf16.mxu0 0
        %1362 = vmatpush2.bf16.msra.mxu0 0
        %1363 = vmatprep.subr.bf16.mxu0 0
        %1364 = vmatpush2.bf16.msra.mxu0 0
        %1365 = vmatprep.subr.bf16.mxu0 0
        %1366 = vmatpush2.bf16.msra.mxu0 0
        %1367 = vmatprep.subr.bf16.mxu0 0
        %1368 = vmatpush2.bf16.msra.mxu0 0
        %1369 = vmatprep.mubr.bf16.mxu0 0
        %1370 = vmatmul.mubr.bf16.gmra.mxu0 %v1089
        %v1371 = vpop.f32.mrf.mxu0
        %v1372 = vadd.f32 0.0, %v1371
        %v1373 = vpop.f32.mrf.mxu0
        %v1374 = vpop.f32.mrf.mxu0
        %v1375 = vadd.f32 0.0, %v1374
        %v1376 = vpop.f32.mrf.mxu0
        %1377 = vdwg.mxu0
        %1378 = vmatprep.subr.bf16.mxu0 0
        %1379 = vmatpush1.bf16.msra.mxu0 0
        %1380 = vmatprep.subr.bf16.mxu0 0
        %1381 = vmatpush1.bf16.msra.mxu0 0
        %1382 = vmatprep.subr.bf16.mxu0 0
        %1383 = vmatpush1.bf16.msra.mxu0 0
        %1384 = vmatprep.subr.bf16.mxu0 0
        %1385 = vmatpush1.bf16.msra.mxu0 0
        %1386 = vmatprep.subr.bf16.mxu0 0
        %1387 = vmatpush1.bf16.msra.mxu0 0
        %1388 = vmatprep.subr.bf16.mxu0 0
        %1389 = vmatpush1.bf16.msra.mxu0 0
        %1390 = vmatprep.subr.bf16.mxu0 0
        %1391 = vmatpush1.bf16.msra.mxu0 0
        %1392 = vmatprep.subr.bf16.mxu0 0
        %1393 = vmatpush1.bf16.msra.mxu0 %v1074
        %1394 = vmatprep.subr.bf16.mxu0 0
        %1395 = vmatpush2.bf16.msra.mxu0 0
        %1396 = vmatprep.subr.bf16.mxu0 0
        %1397 = vmatpush2.bf16.msra.mxu0 0
        %1398 = vmatprep.subr.bf16.mxu0 0
        %1399 = vmatpush2.bf16.msra.mxu0 0
        %1400 = vmatprep.subr.bf16.mxu0 0
        %1401 = vmatpush2.bf16.msra.mxu0 0
        %1402 = vmatprep.subr.bf16.mxu0 0
        %1403 = vmatpush2.bf16.msra.mxu0 0
        %1404 = vmatprep.subr.bf16.mxu0 0
        %1405 = vmatpush2.bf16.msra.mxu0 0
        %1406 = vmatprep.subr.bf16.mxu0 0
        %1407 = vmatpush2.bf16.msra.mxu0 0
        %1408 = vmatprep.subr.bf16.mxu0 0
        %1409 = vmatpush2.bf16.msra.mxu0 0
        %1410 = vmatprep.mubr.bf16.mxu0 0
        %1411 = vmatmul.mubr.bf16.gmra.mxu0 %v1089
        %v1412 = vpop.f32.mrf.mxu0
        %v1413 = vadd.f32 0.0, %v1412
        %v1414 = vpop.f32.mrf.mxu0
        %v1415 = vpop.f32.mrf.mxu0
        %v1416 = vadd.f32 0.0, %v1415
        %v1417 = vpop.f32.mrf.mxu0
        %1418 = vdwg.mxu0
        %1419 = vmatprep.subr.bf16.mxu0 0
        %1420 = vmatpush1.bf16.msra.mxu0 0
        %1421 = vmatprep.subr.bf16.mxu0 0
        %1422 = vmatpush1.bf16.msra.mxu0 0
        %1423 = vmatprep.subr.bf16.mxu0 0
        %1424 = vmatpush1.bf16.msra.mxu0 0
        %1425 = vmatprep.subr.bf16.mxu0 0
        %1426 = vmatpush1.bf16.msra.mxu0 0
        %1427 = vmatprep.subr.bf16.mxu0 0
        %1428 = vmatpush1.bf16.msra.mxu0 0
        %1429 = vmatprep.subr.bf16.mxu0 0
        %1430 = vmatpush1.bf16.msra.mxu0 0
        %1431 = vmatprep.subr.bf16.mxu0 0
        %1432 = vmatpush1.bf16.msra.mxu0 0
        %1433 = vmatprep.subr.bf16.mxu0 0
        %1434 = vmatpush1.bf16.msra.mxu0 %v1075
        %1435 = vmatprep.subr.bf16.mxu0 0
        %1436 = vmatpush2.bf16.msra.mxu0 0
        %1437 = vmatprep.subr.bf16.mxu0 0
        %1438 = vmatpush2.bf16.msra.mxu0 0
        %1439 = vmatprep.subr.bf16.mxu0 0
        %1440 = vmatpush2.bf16.msra.mxu0 0
        %1441 = vmatprep.subr.bf16.mxu0 0
        %1442 = vmatpush2.bf16.msra.mxu0 0
        %1443 = vmatprep.subr.bf16.mxu0 0
        %1444 = vmatpush2.bf16.msra.mxu0 0
        %1445 = vmatprep.subr.bf16.mxu0 0
        %1446 = vmatpush2.bf16.msra.mxu0 0
        %1447 = vmatprep.subr.bf16.mxu0 0
        %1448 = vmatpush2.bf16.msra.mxu0 0
        %1449 = vmatprep.subr.bf16.mxu0 0
        %1450 = vmatpush2.bf16.msra.mxu0 0
        %1451 = vmatprep.mubr.bf16.mxu0 0
        %1452 = vmatmul.mubr.bf16.gmra.mxu0 %v1089
        %v1453 = vpop.f32.mrf.mxu0
        %v1454 = vadd.f32 0.0, %v1453
        %v1455 = vpop.f32.mrf.mxu0
        %v1456 = vpop.f32.mrf.mxu0
        %v1457 = vadd.f32 0.0, %v1456
        %v1458 = vpop.f32.mrf.mxu0
        %1459 = vdwg.mxu0
        %1460 = vmatprep.subr.bf16.mxu0 0
        %1461 = vmatpush1.bf16.msra.mxu0 0
        %1462 = vmatprep.subr.bf16.mxu0 0
        %1463 = vmatpush1.bf16.msra.mxu0 0
        %1464 = vmatprep.subr.bf16.mxu0 0
        %1465 = vmatpush1.bf16.msra.mxu0 0
        %1466 = vmatprep.subr.bf16.mxu0 0
        %1467 = vmatpush1.bf16.msra.mxu0 0
        %1468 = vmatprep.subr.bf16.mxu0 0
        %1469 = vmatpush1.bf16.msra.mxu0 0
        %1470 = vmatprep.subr.bf16.mxu0 0
        %1471 = vmatpush1.bf16.msra.mxu0 0
        %1472 = vmatprep.subr.bf16.mxu0 0
        %1473 = vmatpush1.bf16.msra.mxu0 0
        %1474 = vmatprep.subr.bf16.mxu0 0
        %1475 = vmatpush1.bf16.msra.mxu0 %v1076
        %1476 = vmatprep.subr.bf16.mxu0 0
        %1477 = vmatpush2.bf16.msra.mxu0 0
        %1478 = vmatprep.subr.bf16.mxu0 0
        %1479 = vmatpush2.bf16.msra.mxu0 0
        %1480 = vmatprep.subr.bf16.mxu0 0
        %1481 = vmatpush2.bf16.msra.mxu0 0
        %1482 = vmatprep.subr.bf16.mxu0 0
        %1483 = vmatpush2.bf16.msra.mxu0 0
        %1484 = vmatprep.subr.bf16.mxu0 0
        %1485 = vmatpush2.bf16.msra.mxu0 0
        %1486 = vmatprep.subr.bf16.mxu0 0
        %1487 = vmatpush2.bf16.msra.mxu0 0
        %1488 = vmatprep.subr.bf16.mxu0 0
        %1489 = vmatpush2.bf16.msra.mxu0 0
        %1490 = vmatprep.subr.bf16.mxu0 0
        %1491 = vmatpush2.bf16.msra.mxu0 0
        %1492 = vmatprep.mubr.bf16.mxu0 0
        %1493 = vmatmul.mubr.bf16.gmra.mxu0 %v1089
        %v1494 = vpop.f32.mrf.mxu0
        %v1495 = vadd.f32 0.0, %v1494
        %v1496 = vpop.f32.mrf.mxu0
        %v1497 = vpop.f32.mrf.mxu0
        %v1498 = vadd.f32 0.0, %v1497
        %v1499 = vpop.f32.mrf.mxu0
        %1500 = vdwg.mxu0
        %1501 = vmatprep.subr.bf16.mxu0 0
        %1502 = vmatpush1.bf16.msra.mxu0 0
        %1503 = vmatprep.subr.bf16.mxu0 0
        %1504 = vmatpush1.bf16.msra.mxu0 0
        %1505 = vmatprep.subr.bf16.mxu0 0
        %1506 = vmatpush1.bf16.msra.mxu0 0
        %1507 = vmatprep.subr.bf16.mxu0 0
        %1508 = vmatpush1.bf16.msra.mxu0 0
        %1509 = vmatprep.subr.bf16.mxu0 0
        %1510 = vmatpush1.bf16.msra.mxu0 0
        %1511 = vmatprep.subr.bf16.mxu0 0
        %1512 = vmatpush1.bf16.msra.mxu0 0
        %1513 = vmatprep.subr.bf16.mxu0 0
        %1514 = vmatpush1.bf16.msra.mxu0 0
        %1515 = vmatprep.subr.bf16.mxu0 0
        %1516 = vmatpush1.bf16.msra.mxu0 %v1077
        %1517 = vmatprep.subr.bf16.mxu0 0
        %1518 = vmatpush2.bf16.msra.mxu0 0
        %1519 = vmatprep.subr.bf16.mxu0 0
        %1520 = vmatpush2.bf16.msra.mxu0 0
        %1521 = vmatprep.subr.bf16.mxu0 0
        %1522 = vmatpush2.bf16.msra.mxu0 0
        %1523 = vmatprep.subr.bf16.mxu0 0
        %1524 = vmatpush2.bf16.msra.mxu0 0
        %1525 = vmatprep.subr.bf16.mxu0 0
        %1526 = vmatpush2.bf16.msra.mxu0 0
        %1527 = vmatprep.subr.bf16.mxu0 0
        %1528 = vmatpush2.bf16.msra.mxu0 0
        %1529 = vmatprep.subr.bf16.mxu0 0
        %1530 = vmatpush2.bf16.msra.mxu0 0
        %1531 = vmatprep.subr.bf16.mxu0 0
        %1532 = vmatpush2.bf16.msra.mxu0 0
        %1533 = vmatprep.mubr.bf16.mxu0 0
        %1534 = vmatmul.mubr.bf16.gmra.mxu0 %v1089
        %v1535 = vpop.f32.mrf.mxu0
        %v1536 = vadd.f32 0.0, %v1535
        %v1537 = vpop.f32.mrf.mxu0
        %v1538 = vpop.f32.mrf.mxu0
        %v1539 = vadd.f32 0.0, %v1538
        %v1540 = vpop.f32.mrf.mxu0
        %1541 = vdwg.mxu0
        %1542 = vmatprep.subr.bf16.mxu0 0
        %1543 = vmatpush1.bf16.msra.mxu0 0
        %1544 = vmatprep.subr.bf16.mxu0 0
        %1545 = vmatpush1.bf16.msra.mxu0 0
        %1546 = vmatprep.subr.bf16.mxu0 0
        %1547 = vmatpush1.bf16.msra.mxu0 0
        %1548 = vmatprep.subr.bf16.mxu0 0
        %1549 = vmatpush1.bf16.msra.mxu0 0
        %1550 = vmatprep.subr.bf16.mxu0 0
        %1551 = vmatpush1.bf16.msra.mxu0 0
        %1552 = vmatprep.subr.bf16.mxu0 0
        %1553 = vmatpush1.bf16.msra.mxu0 0
        %1554 = vmatprep.subr.bf16.mxu0 0
        %1555 = vmatpush1.bf16.msra.mxu0 0
        %1556 = vmatprep.subr.bf16.mxu0 0
        %1557 = vmatpush1.bf16.msra.mxu0 %v1078
        %1558 = vmatprep.subr.bf16.mxu0 0
        %1559 = vmatpush2.bf16.msra.mxu0 0
        %1560 = vmatprep.subr.bf16.mxu0 0
        %1561 = vmatpush2.bf16.msra.mxu0 0
        %1562 = vmatprep.subr.bf16.mxu0 0
        %1563 = vmatpush2.bf16.msra.mxu0 0
        %1564 = vmatprep.subr.bf16.mxu0 0
        %1565 = vmatpush2.bf16.msra.mxu0 0
        %1566 = vmatprep.subr.bf16.mxu0 0
        %1567 = vmatpush2.bf16.msra.mxu0 0
        %1568 = vmatprep.subr.bf16.mxu0 0
        %1569 = vmatpush2.bf16.msra.mxu0 0
        %1570 = vmatprep.subr.bf16.mxu0 0
        %1571 = vmatpush2.bf16.msra.mxu0 0
        %1572 = vmatprep.subr.bf16.mxu0 0
        %1573 = vmatpush2.bf16.msra.mxu0 0
        %1574 = vmatprep.mubr.bf16.mxu0 0
        %1575 = vmatmul.mubr.bf16.gmra.mxu0 %v1089
        %v1576 = vpop.f32.mrf.mxu0
        %v1577 = vadd.f32 0.0, %v1576
        %v1578 = vpop.f32.mrf.mxu0
        %v1579 = vpop.f32.mrf.mxu0
        %v1580 = vadd.f32 0.0, %v1579
        %v1581 = vpop.f32.mrf.mxu0
        %1582 = vdwg.mxu0
        %1583 = vmatprep.subr.bf16.mxu0 0
        %1584 = vmatpush1.bf16.msra.mxu0 0
        %1585 = vmatprep.subr.bf16.mxu0 0
        %1586 = vmatpush1.bf16.msra.mxu0 0
        %1587 = vmatprep.subr.bf16.mxu0 0
        %1588 = vmatpush1.bf16.msra.mxu0 0
        %1589 = vmatprep.subr.bf16.mxu0 0
        %1590 = vmatpush1.bf16.msra.mxu0 0
        %1591 = vmatprep.subr.bf16.mxu0 0
        %1592 = vmatpush1.bf16.msra.mxu0 0
        %1593 = vmatprep.subr.bf16.mxu0 0
        %1594 = vmatpush1.bf16.msra.mxu0 0
        %1595 = vmatprep.subr.bf16.mxu0 0
        %1596 = vmatpush1.bf16.msra.mxu0 0
        %1597 = vmatprep.subr.bf16.mxu0 0
        %1598 = vmatpush1.bf16.msra.mxu0 %v1079
        %1599 = vmatprep.subr.bf16.mxu0 0
        %1600 = vmatpush2.bf16.msra.mxu0 0
        %1601 = vmatprep.subr.bf16.mxu0 0
        %1602 = vmatpush2.bf16.msra.mxu0 0
        %1603 = vmatprep.subr.bf16.mxu0 0
        %1604 = vmatpush2.bf16.msra.mxu0 0
        %1605 = vmatprep.subr.bf16.mxu0 0
        %1606 = vmatpush2.bf16.msra.mxu0 0
        %1607 = vmatprep.subr.bf16.mxu0 0
        %1608 = vmatpush2.bf16.msra.mxu0 0
        %1609 = vmatprep.subr.bf16.mxu0 0
        %1610 = vmatpush2.bf16.msra.mxu0 0
        %1611 = vmatprep.subr.bf16.mxu0 0
        %1612 = vmatpush2.bf16.msra.mxu0 0
        %1613 = vmatprep.subr.bf16.mxu0 0
        %1614 = vmatpush2.bf16.msra.mxu0 0
        %1615 = vmatprep.mubr.bf16.mxu0 0
        %1616 = vmatmul.mubr.bf16.gmra.mxu0 %v1089
        %v1617 = vpop.f32.mrf.mxu0
        %v1618 = vadd.f32 0.0, %v1617
        %v1619 = vpop.f32.mrf.mxu0
        %v1620 = vpop.f32.mrf.mxu0
        %v1621 = vadd.f32 0.0, %v1620
        %v1622 = vpop.f32.mrf.mxu0
        %1623 = vdwg.mxu0
        %1624 = vmatprep.subr.bf16.mxu0 0
        %1625 = vmatpush1.bf16.msra.mxu0 0
        %1626 = vmatprep.subr.bf16.mxu0 0
        %1627 = vmatpush1.bf16.msra.mxu0 0
        %1628 = vmatprep.subr.bf16.mxu0 0
        %1629 = vmatpush1.bf16.msra.mxu0 0
        %1630 = vmatprep.subr.bf16.mxu0 0
        %1631 = vmatpush1.bf16.msra.mxu0 0
        %1632 = vmatprep.subr.bf16.mxu0 0
        %1633 = vmatpush1.bf16.msra.mxu0 0
        %1634 = vmatprep.subr.bf16.mxu0 0
        %1635 = vmatpush1.bf16.msra.mxu0 0
        %1636 = vmatprep.subr.bf16.mxu0 0
        %1637 = vmatpush1.bf16.msra.mxu0 0
        %1638 = vmatprep.subr.bf16.mxu0 0
        %1639 = vmatpush1.bf16.msra.mxu0 %v1080
        %1640 = vmatprep.subr.bf16.mxu0 0
        %1641 = vmatpush2.bf16.msra.mxu0 0
        %1642 = vmatprep.subr.bf16.mxu0 0
        %1643 = vmatpush2.bf16.msra.mxu0 0
        %1644 = vmatprep.subr.bf16.mxu0 0
        %1645 = vmatpush2.bf16.msra.mxu0 0
        %1646 = vmatprep.subr.bf16.mxu0 0
        %1647 = vmatpush2.bf16.msra.mxu0 0
        %1648 = vmatprep.subr.bf16.mxu0 0
        %1649 = vmatpush2.bf16.msra.mxu0 0
        %1650 = vmatprep.subr.bf16.mxu0 0
        %1651 = vmatpush2.bf16.msra.mxu0 0
        %1652 = vmatprep.subr.bf16.mxu0 0
        %1653 = vmatpush2.bf16.msra.mxu0 0
        %1654 = vmatprep.subr.bf16.mxu0 0
        %1655 = vmatpush2.bf16.msra.mxu0 0
        %1656 = vmatprep.mubr.bf16.mxu0 0
        %1657 = vmatmul.mubr.bf16.gmra.mxu0 %v1089
        %v1658 = vpop.f32.mrf.mxu0
        %v1659 = vadd.f32 0.0, %v1658
        %v1660 = vpop.f32.mrf.mxu0
        %v1661 = vpop.f32.mrf.mxu0
        %v1662 = vadd.f32 0.0, %v1661
        %v1663 = vpop.f32.mrf.mxu0
        %1664 = vdwg.mxu0
        %1665 = vmatprep.subr.bf16.mxu0 0
        %1666 = vmatpush1.bf16.msra.mxu0 0
        %1667 = vmatprep.subr.bf16.mxu0 0
        %1668 = vmatpush1.bf16.msra.mxu0 0
        %1669 = vmatprep.subr.bf16.mxu0 0
        %1670 = vmatpush1.bf16.msra.mxu0 0
        %1671 = vmatprep.subr.bf16.mxu0 0
        %1672 = vmatpush1.bf16.msra.mxu0 0
        %1673 = vmatprep.subr.bf16.mxu0 0
        %1674 = vmatpush1.bf16.msra.mxu0 0
        %1675 = vmatprep.subr.bf16.mxu0 0
        %1676 = vmatpush1.bf16.msra.mxu0 0
        %1677 = vmatprep.subr.bf16.mxu0 0
        %1678 = vmatpush1.bf16.msra.mxu0 0
        %1679 = vmatprep.subr.bf16.mxu0 0
        %1680 = vmatpush1.bf16.msra.mxu0 %v1081
        %1681 = vmatprep.subr.bf16.mxu0 0
        %1682 = vmatpush2.bf16.msra.mxu0 0
        %1683 = vmatprep.subr.bf16.mxu0 0
        %1684 = vmatpush2.bf16.msra.mxu0 0
        %1685 = vmatprep.subr.bf16.mxu0 0
        %1686 = vmatpush2.bf16.msra.mxu0 0
        %1687 = vmatprep.subr.bf16.mxu0 0
        %1688 = vmatpush2.bf16.msra.mxu0 0
        %1689 = vmatprep.subr.bf16.mxu0 0
        %1690 = vmatpush2.bf16.msra.mxu0 0
        %1691 = vmatprep.subr.bf16.mxu0 0
        %1692 = vmatpush2.bf16.msra.mxu0 0
        %1693 = vmatprep.subr.bf16.mxu0 0
        %1694 = vmatpush2.bf16.msra.mxu0 0
        %1695 = vmatprep.subr.bf16.mxu0 0
        %1696 = vmatpush2.bf16.msra.mxu0 0
        %1697 = vmatprep.mubr.bf16.mxu0 0
        %1698 = vmatmul.mubr.bf16.gmra.mxu0 %v1089
        %v1699 = vpop.f32.mrf.mxu0
        %v1700 = vadd.f32 0.0, %v1699
        %v1701 = vpop.f32.mrf.mxu0
        %v1702 = vpop.f32.mrf.mxu0
        %v1703 = vadd.f32 0.0, %v1702
        %v1704 = vpop.f32.mrf.mxu0
        %1705 = vdwg.mxu0
        %1706 = vmatprep.subr.bf16.mxu0 0
        %1707 = vmatpush1.bf16.msra.mxu0 0
        %1708 = vmatprep.subr.bf16.mxu0 0
        %1709 = vmatpush1.bf16.msra.mxu0 0
        %1710 = vmatprep.subr.bf16.mxu0 0
        %1711 = vmatpush1.bf16.msra.mxu0 0
        %1712 = vmatprep.subr.bf16.mxu0 0
        %1713 = vmatpush1.bf16.msra.mxu0 0
        %1714 = vmatprep.subr.bf16.mxu0 0
        %1715 = vmatpush1.bf16.msra.mxu0 0
        %1716 = vmatprep.subr.bf16.mxu0 0
        %1717 = vmatpush1.bf16.msra.mxu0 0
        %1718 = vmatprep.subr.bf16.mxu0 0
        %1719 = vmatpush1.bf16.msra.mxu0 0
        %1720 = vmatprep.subr.bf16.mxu0 0
        %1721 = vmatpush1.bf16.msra.mxu0 %v1082
        %1722 = vmatprep.subr.bf16.mxu0 0
        %1723 = vmatpush2.bf16.msra.mxu0 0
        %1724 = vmatprep.subr.bf16.mxu0 0
        %1725 = vmatpush2.bf16.msra.mxu0 0
        %1726 = vmatprep.subr.bf16.mxu0 0
        %1727 = vmatpush2.bf16.msra.mxu0 0
        %1728 = vmatprep.subr.bf16.mxu0 0
        %1729 = vmatpush2.bf16.msra.mxu0 0
        %1730 = vmatprep.subr.bf16.mxu0 0
        %1731 = vmatpush2.bf16.msra.mxu0 0
        %1732 = vmatprep.subr.bf16.mxu0 0
        %1733 = vmatpush2.bf16.msra.mxu0 0
        %1734 = vmatprep.subr.bf16.mxu0 0
        %1735 = vmatpush2.bf16.msra.mxu0 0
        %1736 = vmatprep.subr.bf16.mxu0 0
        %1737 = vmatpush2.bf16.msra.mxu0 0
        %1738 = vmatprep.mubr.bf16.mxu0 0
        %1739 = vmatmul.mubr.bf16.gmra.mxu0 %v1089
        %v1740 = vpop.f32.mrf.mxu0
        %v1741 = vadd.f32 0.0, %v1740
        %v1742 = vpop.f32.mrf.mxu0
        %v1743 = vpop.f32.mrf.mxu0
        %v1744 = vadd.f32 0.0, %v1743
        %v1745 = vpop.f32.mrf.mxu0
        %1746 = vdwg.mxu0
        %v1747 = vpack.c.bf16 %v1129, %v1126
        %v1748 = vpack.c.bf16 %v1170, %v1167
        %v1749 = vpack.c.bf16 %v1211, %v1208
        %v1750 = vpack.c.bf16 %v1252, %v1249
        %v1751 = vpack.c.bf16 %v1293, %v1290
        %v1752 = vpack.c.bf16 %v1334, %v1331
        %v1753 = vpack.c.bf16 %v1375, %v1372
        %v1754 = vpack.c.bf16 %v1416, %v1413
        %v1755 = vpack.c.bf16 %v1457, %v1454
        %v1756 = vpack.c.bf16 %v1498, %v1495
        %v1757 = vpack.c.bf16 %v1539, %v1536
        %v1758 = vpack.c.bf16 %v1580, %v1577
        %v1759 = vpack.c.bf16 %v1621, %v1618
        %v1760 = vpack.c.bf16 %v1662, %v1659
        %v1761 = vpack.c.bf16 %v1703, %v1700
        %v1762 = vpack.c.bf16 %v1744, %v1741
        %v1779 = vunpack.c.l.b16 %v1747
        %v1780 = vunpack.c.h.b16 %v1747
        %v1781 = vunpack.c.l.b16 %v1748
        %v1782 = vunpack.c.h.b16 %v1748
        %v1783 = vunpack.c.l.b16 %v1749
        %v1784 = vunpack.c.h.b16 %v1749
        %v1785 = vunpack.c.l.b16 %v1750
        %v1786 = vunpack.c.h.b16 %v1750
        %v1787 = vunpack.c.l.b16 %v1751
        %v1788 = vunpack.c.h.b16 %v1751
        %v1789 = vunpack.c.l.b16 %v1752
        %v1790 = vunpack.c.h.b16 %v1752
        %v1791 = vunpack.c.l.b16 %v1753
        %v1792 = vunpack.c.h.b16 %v1753
        %v1793 = vunpack.c.l.b16 %v1754
        %v1794 = vunpack.c.h.b16 %v1754
        %v1795 = vunpack.c.l.b16 %v1755
        %v1796 = vunpack.c.h.b16 %v1755
        %v1797 = vunpack.c.l.b16 %v1756
        %v1798 = vunpack.c.h.b16 %v1756
        %v1799 = vunpack.c.l.b16 %v1757
        %v1800 = vunpack.c.h.b16 %v1757
        %v1801 = vunpack.c.l.b16 %v1758
        %v1802 = vunpack.c.h.b16 %v1758
        %v1803 = vunpack.c.l.b16 %v1759
        %v1804 = vunpack.c.h.b16 %v1759
        %v1805 = vunpack.c.l.b16 %v1760
        %v1806 = vunpack.c.h.b16 %v1760
        %v1807 = vunpack.c.l.b16 %v1761
        %v1808 = vunpack.c.h.b16 %v1761
        %v1809 = vunpack.c.l.b16 %v1762
        %v1810 = vunpack.c.h.b16 %v1762
        %v1811 = vpack.c.b16 %v1779, %v1779
        %v1812 = vpack.c.b16 %v1780, %v1780
        %v1813 = vpack.c.b16 %v1781, %v1781
        %v1814 = vpack.c.b16 %v1782, %v1782
        %v1815 = vpack.c.b16 %v1783, %v1783
        %v1816 = vpack.c.b16 %v1784, %v1784
        %v1817 = vpack.c.b16 %v1785, %v1785
        %v1818 = vpack.c.b16 %v1786, %v1786
        %v1819 = vpack.c.b16 %v1787, %v1787
        %v1820 = vpack.c.b16 %v1788, %v1788
        %v1821 = vpack.c.b16 %v1789, %v1789
        %v1822 = vpack.c.b16 %v1790, %v1790
        %v1823 = vpack.c.b16 %v1791, %v1791
        %v1824 = vpack.c.b16 %v1792, %v1792
        %v1825 = vpack.c.b16 %v1793, %v1793
        %v1826 = vpack.c.b16 %v1794, %v1794
        %v1827 = vpack.c.b16 %v1795, %v1795
        %v1828 = vpack.c.b16 %v1796, %v1796
        %v1829 = vpack.c.b16 %v1797, %v1797
        %v1830 = vpack.c.b16 %v1798, %v1798
        %v1831 = vpack.c.b16 %v1799, %v1799
        %v1832 = vpack.c.b16 %v1800, %v1800
        %v1833 = vpack.c.b16 %v1801, %v1801
        %v1834 = vpack.c.b16 %v1802, %v1802
        %v1835 = vpack.c.b16 %v1803, %v1803
        %v1836 = vpack.c.b16 %v1804, %v1804
        %v1837 = vpack.c.b16 %v1805, %v1805
        %v1838 = vpack.c.b16 %v1806, %v1806
        %v1839 = vpack.c.b16 %v1807, %v1807
        %v1840 = vpack.c.b16 %v1808, %v1808
        %v1841 = vpack.c.b16 %v1809, %v1809
        %v1842 = vpack.c.b16 %v1810, %v1810
        %vm1875 = vcmask 125952
        %1876 = vst.msk [vmem:[%s236] sm:$0xf] %vm1875, %v1811
        %1877 = vst.msk [vmem:[%s236 + $0x4] sm:$0xf] %vm1875, %v1812
        %1878 = vst.msk [vmem:[%s236 + $0x8] sm:$0xf] %vm1875, %v1813
        %1879 = vst.msk [vmem:[%s236 + $0xc] sm:$0xf] %vm1875, %v1814
        %1880 = vst.msk [vmem:[%s236 + $0x10] sm:$0xf] %vm1875, %v1815
        %1881 = vst.msk [vmem:[%s236 + $0x14] sm:$0xf] %vm1875, %v1816
        %1882 = vst.msk [vmem:[%s236 + $0x18] sm:$0xf] %vm1875, %v1817
        %1883 = vst.msk [vmem:[%s236 + $0x1c] sm:$0xf] %vm1875, %v1818
        %1884 = vst.msk [vmem:[%s236 + $0x20] sm:$0xf] %vm1875, %v1819
        %1885 = vst.msk [vmem:[%s236 + $0x24] sm:$0xf] %vm1875, %v1820
        %1886 = vst.msk [vmem:[%s236 + $0x28] sm:$0xf] %vm1875, %v1821
        %1887 = vst.msk [vmem:[%s236 + $0x2c] sm:$0xf] %vm1875, %v1822
        %1888 = vst.msk [vmem:[%s236 + $0x30] sm:$0xf] %vm1875, %v1823
        %1889 = vst.msk [vmem:[%s236 + $0x34] sm:$0xf] %vm1875, %v1824
        %1890 = vst.msk [vmem:[%s236 + $0x38] sm:$0xf] %vm1875, %v1825
        %1891 = vst.msk [vmem:[%s236 + $0x3c] sm:$0xf] %vm1875, %v1826
        %1892 = vst.msk [vmem:[%s236 + $0x40] sm:$0xf] %vm1875, %v1827
        %1893 = vst.msk [vmem:[%s236 + $0x44] sm:$0xf] %vm1875, %v1828
        %1894 = vst.msk [vmem:[%s236 + $0x48] sm:$0xf] %vm1875, %v1829
        %1895 = vst.msk [vmem:[%s236 + $0x4c] sm:$0xf] %vm1875, %v1830
        %1896 = vst.msk [vmem:[%s236 + $0x50] sm:$0xf] %vm1875, %v1831
        %1897 = vst.msk [vmem:[%s236 + $0x54] sm:$0xf] %vm1875, %v1832
        %1898 = vst.msk [vmem:[%s236 + $0x58] sm:$0xf] %vm1875, %v1833
        %1899 = vst.msk [vmem:[%s236 + $0x5c] sm:$0xf] %vm1875, %v1834
        %1900 = vst.msk [vmem:[%s236 + $0x60] sm:$0xf] %vm1875, %v1835
        %1901 = vst.msk [vmem:[%s236 + $0x64] sm:$0xf] %vm1875, %v1836
        %1902 = vst.msk [vmem:[%s236 + $0x68] sm:$0xf] %vm1875, %v1837
        %1903 = vst.msk [vmem:[%s236 + $0x6c] sm:$0xf] %vm1875, %v1838
        %1904 = vst.msk [vmem:[%s236 + $0x70] sm:$0xf] %vm1875, %v1839
        %1905 = vst.msk [vmem:[%s236 + $0x74] sm:$0xf] %vm1875, %v1840
        %1906 = vst.msk [vmem:[%s236 + $0x78] sm:$0xf] %vm1875, %v1841
        %1907 = vst.msk [vmem:[%s236 + $0x7c] sm:$0xf] %vm1875, %v1842
        %s1908 = sand.u32 %s113, 1
        %s1909 = scalar_lea.sflag [#allocation4], %s1908
        %s1910 = sand.u32 %s113, 1
        %s1911 = smul.addr %s1910, 128
        %s1912 = scalar_lea.vmem [#allocation8], %s1911
        // Predicated region
        $region45: #{tpu_custom_call.1} parent=31 // pred_check
          %p1913 = pneg %p123
        $region46: #{tpu_custom_call.1} parent=31 // pred_check_branch
          %1915 = sbr.rel (%p1913) target = $region48
        $region47: #{tpu_custom_call.1} parent=31 // pred_region
          %s1916 = smul.u32 16, %s26
          %s1918 = ssub.s32 2048, 2048
          %1919 = vsyncadd %s1909, %s1918
          %s1920 = smul.addr %s1916, 2
          %s1921 = smul.addr %s25, 32
          %s1922 = sadd.s32 %s1920, %s1921
          %s1923 = smul.addr %s1922, 64
          %s1924 = scalar_lea.hbm %s3, %s1923
          %s1925 = sshll.u32 %s1912, 4
          %s1926 = int_to_ptr.vmem [resolvable:$true] %s1925
          %1931 = dma.vmem_to_hbm [thread:$0]  %s1926, 2048, %s1924, %s1909, 64, 64, 4
        $region48: #{tpu_custom_call.1} parent=31 // pred_fallthru
          _
      $region32: #{tpu_custom_call.1} parent=5 // pred_fallthru
        _
      %p1932 = scmp.le.s32.totalorder 2, %s16
      // Predicated region
      $region49: #{tpu_custom_call.1} parent=5 // pred_check
        %p1933 = pneg %p1932
      $region50: #{tpu_custom_call.1} parent=5 // pred_check_branch
        %1935 = sbr.rel (%p1933) target = $region52
      $region51: #{tpu_custom_call.1} parent=5 // pred_region
        %s1936 = ssub.s32 %s16, 2
        // Predicated region
        $region53: #{tpu_custom_call.1} parent=51 // pred_check
          %p1937 = pneg %p129
        $region54: #{tpu_custom_call.1} parent=51 // pred_check_branch
          %1939 = sbr.rel (%p1937) target = $region56
        $region55: #{tpu_custom_call.1} parent=51 // pred_region
          %s1940 = sand.u32 %s114, 1
          %s1941 = scalar_lea.sflag [#allocation4], %s1940
          %s1942 = sand.u32 %s114, 1
          %s1943 = smul.addr %s1942, 128
          %s1944 = scalar_lea.vmem [#allocation8], %s1943
          %1945 = dma.done %s1941, 2048
        $region56: #{tpu_custom_call.1} parent=51 // pred_fallthru
          _
      $region52: #{tpu_custom_call.1} parent=5 // pred_fallthru
        _
    $region6: #{tpu_custom_call.1} parent=1 // loop_footer
      %s20 = sadd.s32 1, %s16
    $region7: #{tpu_custom_call.1} parent=1 // loop_footer_branch
      %15 = sbr.rel target = $region3
    $region8: #{tpu_custom_call.1} parent=1 // loop_exit
      _
    %1946 = vsyncpa [#allocation3], 1
    %s1947 = scalar_lea.sflag [#allocation3], 1
    %1948 = vsyncpa %s1947, 1
    %1949 = vsyncpa [#allocation6], 1
    %1950 = vsyncpa [#allocation4], 1
    %s1951 = scalar_lea.sflag [#allocation4], 1
    %1952 = vsyncpa %s1951, 1

</llo_original>
